<compile_context>
chip_gen: v5e
topology: v5e:2x2
jax: 0.10.0
libtpu: 0.0.40
codegen_flags: <defaults>
</compile_context>

<pallas_src>
import numpy as np
import jax
import jax.numpy as jnp
from jax.experimental import pallas as pl
from jax.experimental.pallas import tpu as pltpu

# ----------------------------- config (small, consistent with the module) -----
FS = 800                 # sample rate (Hz) -> gabor window 21 taps, stride 8
WINDOW_LEN_MS = 25.0
WINDOW_STRIDE_MS = 10.0
HIDDEN = 32              # hidden_channels == skip_channels == output_channels
N_LAYERS = 3
N_BLOCKS = 1
DILATION = 2
KERNEL_SIZE = 2          # matches the hard-coded "(2 - 1)" padding in the module
N_CLASSES = 2
SE_REDUCTION = 4


# ----------------------------- parameter construction (deterministic) ---------
def make_gabor_matrix(n_filters, fs, window_len_ms):
    """Complex Gabor filterbank, channel-major: rows [real_0..real_F-1, imag_0..imag_F-1], shape (2F, W)."""
    W = int(fs * window_len_ms / 1000.0) + 1
    t = np.arange(W, dtype=np.float64) - (W - 1) / 2.0
    fmin, fmax = 60.0, min(7800.0, 0.45 * fs)      # clamp init_max_freq to Nyquist-ish
    center = np.linspace(fmin, fmax, n_filters)
    omega = 2.0 * np.pi * center / fs
    sigma = np.linspace(W / 3.0, W / 8.0, n_filters)
    env = np.exp(-0.5 * (t[None, :] / sigma[:, None]) ** 2) / (np.sqrt(2 * np.pi) * sigma[:, None])
    real = env * np.cos(omega[:, None] * t[None, :])
    imag = env * np.sin(omega[:, None] * t[None, :])
    G = np.concatenate([real, imag], axis=0)        # (2F, W) channel-major
    return jnp.asarray(G, jnp.float32), W


def make_pool_matrix_t(T, fs, window_len_ms, stride_ms):
    """Gaussian-lowpass pooling (shared sigma=0.4 at init) as a transposed (T, T_out) matrix."""
    Wp = int(fs * window_len_ms / 1000.0) + 1
    stride = int(fs * stride_ms / 1000.0)
    pad = Wp // 2
    sigma = 0.4
    k = np.arange(Wp, dtype=np.float64)
    g = np.exp(-0.5 * ((k - 0.5 * (Wp - 1)) / (sigma * 0.5 * (Wp - 1))) ** 2)
    g = g / g.sum()
    T_out = (T + 2 * pad - Wp) // stride + 1
    P = np.zeros((T_out, T), np.float64)
    for to in range(T_out):
        start = to * stride - pad
        for kk in range(Wp):
            j = start + kk
            if 0 <= j < T:
                P[to, j] = g[kk]
    # TODO(synk): at much longer audio this dense O(T^2) matrix should become an
    # in-kernel strided 21-tap window reduction (VMEM scaling trap); fine at T=800.
    return jnp.asarray(P.T, jnp.float32)            # (T, T_out)


def init_params(key, C=HIDDEN, n_layers=N_LAYERS, dilation=DILATION,
                n_blocks=N_BLOCKS, n_classes=N_CLASSES, se_red=SE_REDUCTION):
    dilations = [dilation ** i for i in range(n_layers)] * n_blocks
    n = len(dilations)
    ks = jax.random.split(key, 3 * n + 5)
    p = {}
    # per-layer weights pre-stacked -> single VMEM-resident arrays in the fused kernel
    p["wdw"] = jnp.stack([jax.random.normal(ks[3 * i], (C, KERNEL_SIZE), jnp.float32) / np.sqrt(2.0)
                          for i in range(n)])                       # (n, C, K)
    p["wskip"] = jnp.stack([jax.random.normal(ks[3 * i + 1], (C, C), jnp.float32) * np.sqrt(2.0 / C)
                            for i in range(n)])                     # (n, C, C)
    p["wres"] = jnp.stack([jax.random.normal(ks[3 * i + 2], (C, C), jnp.float32) * np.sqrt(2.0 / C)
                           for i in range(n)])                      # (n, C, C)
    H = C // se_red
    p["se_w1"] = jax.random.normal(ks[3 * n + 0], (H, C), jnp.float32) * np.sqrt(2.0 / C)
    p["se_b1"] = jnp.zeros((H, 1), jnp.float32)
    p["se_w2"] = jax.random.normal(ks[3 * n + 1], (C, H), jnp.float32) * np.sqrt(2.0 / H)
    p["se_b2"] = jnp.zeros((C, 1), jnp.float32)
    p["rn_w1"] = jax.random.normal(ks[3 * n + 2], (C, C), jnp.float32) * np.sqrt(2.0 / C)
    p["rn_w2"] = jax.random.normal(ks[3 * n + 3], (C, C), jnp.float32) * np.sqrt(2.0 / C)
    p["rn_wout"] = jax.random.normal(ks[3 * n + 4], (n_classes, C), jnp.float32) * np.sqrt(1.0 / C)
    p["rn_bout"] = jnp.zeros((n_classes, 1), jnp.float32)
    return p, dilations


# ----------------------------- fused forward kernel ---------------------------
def info_attention_classifier(x, params, dilations, gabor_t, pool_t):
    """x: (B, T) raw audio -> logits (B, n_classes). Entire forward in one pallas_call."""
    B, T = x.shape
    twoF, W = gabor_t.shape
    F = twoF // 2
    T_out = pool_t.shape[1]
    C = HIDDEN
    K = KERNEL_SIZE
    n_lay = len(dilations)
    n_cls = params["rn_wout"].shape[0]
    H = params["se_w1"].shape[0]
    pad_g = W // 2
    max_dil = DILATION ** (N_LAYERS - 1)
    TPAD = 128  # lane-aligned scratch width for the padded WaveNet activations

    def kernel(x_ref, gabor_ref, pool_ref, wdw_ref, wskip_ref, wres_ref,
               sew1_ref, seb1_ref, sew2_ref, seb2_ref,
               rnw1_ref, rnw2_ref, rnwo_ref, rnbo_ref,
               out_ref, frames_scr, xp_scr):
        # ---------------- AudioSpectral (LEAF frontend), channel-major ----------------
        # TODO(synk): exact LEAF post-processing (PCEN / compression) not in the provided
        # source; implemented Gabor conv + |.|^2 + Gaussian lowpass pooling only.
        frames_scr[...] = jnp.zeros_like(frames_scr)       # zero-padded conv boundaries
        xrow = x_ref[0]                                    # (1, T)
        for k in range(W):                                 # build (W, T) shifted frames in VMEM
            lo = max(0, pad_g - k)
            hi = min(T, T + pad_g - k)
            src = lo + k - pad_g
            frames_scr[k:k + 1, lo:hi] = xrow[:, src:src + (hi - lo)]
        u = jnp.dot(gabor_ref[...], frames_scr[...],
                    preferred_element_type=jnp.float32)    # (2F, T)
        real, imag = u[:F], u[F:]
        m = real * real + imag * imag                      # squared modulus (F, T)
        output = jnp.dot(m, pool_ref[...],
                         preferred_element_type=jnp.float32)   # (F, T_out) channel-major

        # ---------------- AudioInfoCollect: dilated depthwise WaveNet stack ----------
        skips = []
        for i, d in enumerate(dilations):                  # static unroll (3 layers)
            pad_i = d * (K - 1) // 2                       # exactly as in the PyTorch module
            l_in = output.shape[1]
            l_out = l_in + 2 * pad_i - d * (K - 1)
            xp_scr[...] = jnp.zeros_like(xp_scr)
            xp_scr[:, pad_i:pad_i + l_in] = output         # zero-padded activation in VMEM
            xp = xp_scr[...]
            wdw_i = wdw_ref[i]                             # (C, K)
            y = wdw_i[:, 0:1] * xp[:, 0:l_out] + wdw_i[:, 1:2] * xp[:, d:d + l_out]
            skips.append(jnp.dot(wskip_ref[i], y, preferred_element_type=jnp.float32))
            r = jnp.maximum(y, 0.0)                        # ReLU
            res = jnp.dot(wres_ref[i], r, preferred_element_type=jnp.float32)
            output = res + output[:, l_in - l_out:]        # right-aligned residual (as in PyTorch)
            if d == max_dil:                               # SE attention over summed skips
                # TODO(synk): ChannelTimeSenseAttentionSELayer source not provided; standard
                # SE (avg-pool -> FC -> ReLU -> FC -> sigmoid -> channel scale) implemented.
                L = output.shape[1]
                ssum = skips[0][:, skips[0].shape[1] - L:]
                for s in skips[1:]:
                    ssum = ssum + s[:, s.shape[1] - L:]
                pooled = jnp.mean(ssum, axis=1, keepdims=True)               # (C, 1)
                h = jnp.maximum(jnp.dot(sew1_ref[...], pooled,
                                        preferred_element_type=jnp.float32) + seb1_ref[...], 0.0)
                att = jax.nn.sigmoid(jnp.dot(sew2_ref[...], h,
                                             preferred_element_type=jnp.float32) + seb2_ref[...])
                output = ssum * att
                skips = []

        # ---------------- ResNet classification head ----------------
        # TODO(synk): `ResNet(channels, 2)` definition not provided; single 1x1-conv residual
        # block + global mean pool + linear classifier of matching I/O shape implemented.
        h = jnp.maximum(jnp.dot(rnw1_ref[...], output, preferred_element_type=jnp.float32), 0.0)
        h = jnp.dot(rnw2_ref[...], h, preferred_element_type=jnp.float32)
        z = jnp.maximum(output + h, 0.0)
        pooled = jnp.mean(z, axis=1, keepdims=True)                          # (C, 1)
        logits = jnp.dot(rnwo_ref[...], pooled,
                         preferred_element_type=jnp.float32) + rnbo_ref[...]  # (n_cls, 1)
        out_ref[0] = logits

    out = pl.pallas_call(
        kernel,
        out_shape=jax.ShapeDtypeStruct((B, n_cls, 1), jnp.float32),
        grid=(B,),
        in_specs=[
            pl.BlockSpec((1, 1, T), lambda b: (b, 0, 0)),           # raw audio, per batch
            pl.BlockSpec((twoF, W), lambda b: (0, 0)),              # gabor filterbank (2F, W)
            pl.BlockSpec((T, T_out), lambda b: (0, 0)),             # pooling matrix^T
            pl.BlockSpec((n_lay, C, K), lambda b: (0, 0, 0)),       # stacked depthwise weights
            pl.BlockSpec((n_lay, C, C), lambda b: (0, 0, 0)),       # stacked skip 1x1
            pl.BlockSpec((n_lay, C, C), lambda b: (0, 0, 0)),       # stacked resi 1x1
            pl.BlockSpec((H, C), lambda b: (0, 0)),                 # SE w1
            pl.BlockSpec((H, 1), lambda b: (0, 0)),                 # SE b1
            pl.BlockSpec((C, H), lambda b: (0, 0)),                 # SE w2
            pl.BlockSpec((C, 1), lambda b: (0, 0)),                 # SE b2
            pl.BlockSpec((C, C), lambda b: (0, 0)),                 # head w1
            pl.BlockSpec((C, C), lambda b: (0, 0)),                 # head w2
            pl.BlockSpec((n_cls, C), lambda b: (0, 0)),             # head wout
            pl.BlockSpec((n_cls, 1), lambda b: (0, 0)),             # head bout
        ],
        out_specs=pl.BlockSpec((1, n_cls, 1), lambda b: (b, 0, 0)),
        scratch_shapes=[pltpu.VMEM((W, T), jnp.float32),            # shifted-frames buffer
                        pltpu.VMEM((C, TPAD), jnp.float32)],        # padded activation buffer
        compiler_params=pltpu.CompilerParams(dimension_semantics=("parallel",)),
    )(x.reshape(B, 1, T), gabor_t, pool_t,
      params["wdw"], params["wskip"], params["wres"],
      params["se_w1"], params["se_b1"], params["se_w2"], params["se_b2"],
      params["rn_w1"], params["rn_w2"], params["rn_wout"], params["rn_bout"])
    return out[:, :, 0]                                             # (B, n_cls)


if __name__ == "__main__":
    B = 2
    T_AUDIO = 800                                                   # 1 second at fs=800

    key = jax.random.PRNGKey(0)
    k_x, k_p = jax.random.split(key)
    x = jax.random.normal(k_x, (B, T_AUDIO), jnp.float32)           # raw waveform (B, T)

    gabor_t, _ = make_gabor_matrix(HIDDEN, FS, WINDOW_LEN_MS)
    pool_t = make_pool_matrix_t(T_AUDIO, FS, WINDOW_LEN_MS, WINDOW_STRIDE_MS)
    params, dilations = init_params(k_p)

    fwd = jax.jit(lambda xx: info_attention_classifier(xx, params, dilations, gabor_t, pool_t))
    logits = jax.block_until_ready(fwd(x))
    assert logits.shape == (B, N_CLASSES), logits.shape
    assert bool(jnp.all(jnp.isfinite(logits)))
    print("KERNEL_OK")
</pallas_src>

<mosaic_0001>
module attributes {stable_mosaic.version = 11 : i64} {
  func.func @kernel(%arg0: i32, %arg1: memref<1x1x800xf32, #tpu.memory_space<vmem>>, %arg2: memref<64x21xf32, #tpu.memory_space<vmem>>, %arg3: memref<800x100xf32, #tpu.memory_space<vmem>>, %arg4: memref<3x32x2xf32, #tpu.memory_space<vmem>>, %arg5: memref<3x32x32xf32, #tpu.memory_space<vmem>>, %arg6: memref<3x32x32xf32, #tpu.memory_space<vmem>>, %arg7: memref<8x32xf32, #tpu.memory_space<vmem>>, %arg8: memref<8x1xf32, #tpu.memory_space<vmem>>, %arg9: memref<32x8xf32, #tpu.memory_space<vmem>>, %arg10: memref<32x1xf32, #tpu.memory_space<vmem>>, %arg11: memref<32x32xf32, #tpu.memory_space<vmem>>, %arg12: memref<32x32xf32, #tpu.memory_space<vmem>>, %arg13: memref<2x32xf32, #tpu.memory_space<vmem>>, %arg14: memref<2x1xf32, #tpu.memory_space<vmem>>, %arg15: memref<1x2x1xf32, #tpu.memory_space<vmem>>, %arg16: memref<21x800xf32, #tpu.memory_space<vmem>>, %arg17: memref<32x128xf32, #tpu.memory_space<vmem>>) attributes {dimension_semantics = [#tpu.dimension_semantics<parallel>], iteration_bounds = array<i64: 2>, scalar_prefetch = 0 : i64, scratch_operands = 2 : i64, tpu.core_type = #tpu.core_type<tc>, window_params = [{transform_indices = @transform_0, window_bounds = array<i64: 1, 1, 800>}, {pipeline_mode = #tpu.pipeline_mode<synchronous>, transform_indices = @transform_1, window_bounds = array<i64: 64, 21>}, {pipeline_mode = #tpu.pipeline_mode<synchronous>, transform_indices = @transform_2, window_bounds = array<i64: 800, 100>}, {pipeline_mode = #tpu.pipeline_mode<synchronous>, transform_indices = @transform_3, window_bounds = array<i64: 3, 32, 2>}, {pipeline_mode = #tpu.pipeline_mode<synchronous>, transform_indices = @transform_4, window_bounds = array<i64: 3, 32, 32>}, {pipeline_mode = #tpu.pipeline_mode<synchronous>, transform_indices = @transform_5, window_bounds = array<i64: 3, 32, 32>}, {pipeline_mode = #tpu.pipeline_mode<synchronous>, transform_indices = @transform_6, window_bounds = array<i64: 8, 32>}, {pipeline_mode = #tpu.pipeline_mode<synchronous>, transform_indices = @transform_7, window_bounds = array<i64: 8, 1>}, {pipeline_mode = #tpu.pipeline_mode<synchronous>, transform_indices = @transform_8, window_bounds = array<i64: 32, 8>}, {pipeline_mode = #tpu.pipeline_mode<synchronous>, transform_indices = @transform_9, window_bounds = array<i64: 32, 1>}, {pipeline_mode = #tpu.pipeline_mode<synchronous>, transform_indices = @transform_10, window_bounds = array<i64: 32, 32>}, {pipeline_mode = #tpu.pipeline_mode<synchronous>, transform_indices = @transform_11, window_bounds = array<i64: 32, 32>}, {pipeline_mode = #tpu.pipeline_mode<synchronous>, transform_indices = @transform_12, window_bounds = array<i64: 2, 32>}, {pipeline_mode = #tpu.pipeline_mode<synchronous>, transform_indices = @transform_13, window_bounds = array<i64: 2, 1>}, {transform_indices = @transform_14, window_bounds = array<i64: 1, 2, 1>}]} {
    %cst = arith.constant 0.000000e+00 : f32
    %0 = vector.broadcast %cst : f32 to vector<21x800xf32>
    %c0 = arith.constant 0 : index
    %c0_0 = arith.constant 0 : index
    %1 = vector.load %arg16[%c0, %c0_0] : memref<21x800xf32, #tpu.memory_space<vmem>>, vector<21x800xf32>
    tpu.vector_store %arg16[%c0, %c0_0], %0 {strides = array<i32>} : memref<21x800xf32, #tpu.memory_space<vmem>>, vector<21x800xf32>,
    %c0_1 = arith.constant 0 : index
    %c0_2 = arith.constant 0 : index
    %c0_3 = arith.constant 0 : index
    %2 = vector.load %arg1[%c0_1, %c0_2, %c0_3] : memref<1x1x800xf32, #tpu.memory_space<vmem>>, vector<1x1x800xf32>
    %3 = vector.shape_cast %2 : vector<1x1x800xf32> to vector<1x800xf32>
    %4 = vector.extract_strided_slice %3 {offsets = [0, 0], sizes = [1, 790], strides = [1, 1]} : vector<1x800xf32> to vector<1x790xf32>
    %c0_4 = arith.constant 0 : index
    %c10 = arith.constant 10 : index
    %5 = vector.load %arg16[%c0_4, %c10] : memref<21x800xf32, #tpu.memory_space<vmem>>, vector<1x790xf32>
    tpu.vector_store %arg16[%c0_4, %c10], %4 {strides = array<i32>} : memref<21x800xf32, #tpu.memory_space<vmem>>, vector<1x790xf32>,
    %6 = vector.extract_strided_slice %3 {offsets = [0, 0], sizes = [1, 791], strides = [1, 1]} : vector<1x800xf32> to vector<1x791xf32>
    %c1 = arith.constant 1 : index
    %c9 = arith.constant 9 : index
    %7 = vector.load %arg16[%c1, %c9] : memref<21x800xf32, #tpu.memory_space<vmem>>, vector<1x791xf32>
    tpu.vector_store %arg16[%c1, %c9], %6 {strides = array<i32>} : memref<21x800xf32, #tpu.memory_space<vmem>>, vector<1x791xf32>,
    %8 = vector.extract_strided_slice %3 {offsets = [0, 0], sizes = [1, 792], strides = [1, 1]} : vector<1x800xf32> to vector<1x792xf32>
    %c2 = arith.constant 2 : index
    %c8 = arith.constant 8 : index
    %9 = vector.load %arg16[%c2, %c8] : memref<21x800xf32, #tpu.memory_space<vmem>>, vector<1x792xf32>
    tpu.vector_store %arg16[%c2, %c8], %8 {strides = array<i32>} : memref<21x800xf32, #tpu.memory_space<vmem>>, vector<1x792xf32>,
    %10 = vector.extract_strided_slice %3 {offsets = [0, 0], sizes = [1, 793], strides = [1, 1]} : vector<1x800xf32> to vector<1x793xf32>
    %c3 = arith.constant 3 : index
    %c7 = arith.constant 7 : index
    %11 = vector.load %arg16[%c3, %c7] : memref<21x800xf32, #tpu.memory_space<vmem>>, vector<1x793xf32>
    tpu.vector_store %arg16[%c3, %c7], %10 {strides = array<i32>} : memref<21x800xf32, #tpu.memory_space<vmem>>, vector<1x793xf32>,
    %12 = vector.extract_strided_slice %3 {offsets = [0, 0], sizes = [1, 794], strides = [1, 1]} : vector<1x800xf32> to vector<1x794xf32>
    %c4 = arith.constant 4 : index
    %c6 = arith.constant 6 : index
    %13 = vector.load %arg16[%c4, %c6] : memref<21x800xf32, #tpu.memory_space<vmem>>, vector<1x794xf32>
    tpu.vector_store %arg16[%c4, %c6], %12 {strides = array<i32>} : memref<21x800xf32, #tpu.memory_space<vmem>>, vector<1x794xf32>,
    %14 = vector.extract_strided_slice %3 {offsets = [0, 0], sizes = [1, 795], strides = [1, 1]} : vector<1x800xf32> to vector<1x795xf32>
    %c5 = arith.constant 5 : index
    %c5_5 = arith.constant 5 : index
    %15 = vector.load %arg16[%c5, %c5_5] : memref<21x800xf32, #tpu.memory_space<vmem>>, vector<1x795xf32>
    tpu.vector_store %arg16[%c5, %c5_5], %14 {strides = array<i32>} : memref<21x800xf32, #tpu.memory_space<vmem>>, vector<1x795xf32>,
    %16 = vector.extract_strided_slice %3 {offsets = [0, 0], sizes = [1, 796], strides = [1, 1]} : vector<1x800xf32> to vector<1x796xf32>
    %c6_6 = arith.constant 6 : index
    %c4_7 = arith.constant 4 : index
    %17 = vector.load %arg16[%c6_6, %c4_7] : memref<21x800xf32, #tpu.memory_space<vmem>>, vector<1x796xf32>
    tpu.vector_store %arg16[%c6_6, %c4_7], %16 {strides = array<i32>} : memref<21x800xf32, #tpu.memory_space<vmem>>, vector<1x796xf32>,
    %18 = vector.extract_strided_slice %3 {offsets = [0, 0], sizes = [1, 797], strides = [1, 1]} : vector<1x800xf32> to vector<1x797xf32>
    %c7_8 = arith.constant 7 : index
    %c3_9 = arith.constant 3 : index
    %19 = vector.load %arg16[%c7_8, %c3_9] : memref<21x800xf32, #tpu.memory_space<vmem>>, vector<1x797xf32>
    tpu.vector_store %arg16[%c7_8, %c3_9], %18 {strides = array<i32>} : memref<21x800xf32, #tpu.memory_space<vmem>>, vector<1x797xf32>,
    %20 = vector.extract_strided_slice %3 {offsets = [0, 0], sizes = [1, 798], strides = [1, 1]} : vector<1x800xf32> to vector<1x798xf32>
    %c8_10 = arith.constant 8 : index
    %c2_11 = arith.constant 2 : index
    %21 = vector.load %arg16[%c8_10, %c2_11] : memref<21x800xf32, #tpu.memory_space<vmem>>, vector<1x798xf32>
    tpu.vector_store %arg16[%c8_10, %c2_11], %20 {strides = array<i32>} : memref<21x800xf32, #tpu.memory_space<vmem>>, vector<1x798xf32>,
    %22 = vector.extract_strided_slice %3 {offsets = [0, 0], sizes = [1, 799], strides = [1, 1]} : vector<1x800xf32> to vector<1x799xf32>
    %c9_12 = arith.constant 9 : index
    %c1_13 = arith.constant 1 : index
    %23 = vector.load %arg16[%c9_12, %c1_13] : memref<21x800xf32, #tpu.memory_space<vmem>>, vector<1x799xf32>
    tpu.vector_store %arg16[%c9_12, %c1_13], %22 {strides = array<i32>} : memref<21x800xf32, #tpu.memory_space<vmem>>, vector<1x799xf32>,
    %c10_14 = arith.constant 10 : index
    %c0_15 = arith.constant 0 : index
    %24 = vector.load %arg16[%c10_14, %c0_15] : memref<21x800xf32, #tpu.memory_space<vmem>>, vector<1x800xf32>
    tpu.vector_store %arg16[%c10_14, %c0_15], %3 {strides = array<i32>} : memref<21x800xf32, #tpu.memory_space<vmem>>, vector<1x800xf32>,
    %25 = vector.extract_strided_slice %3 {offsets = [0, 1], sizes = [1, 799], strides = [1, 1]} : vector<1x800xf32> to vector<1x799xf32>
    %c11 = arith.constant 11 : index
    %c0_16 = arith.constant 0 : index
    %26 = vector.load %arg16[%c11, %c0_16] : memref<21x800xf32, #tpu.memory_space<vmem>>, vector<1x799xf32>
    tpu.vector_store %arg16[%c11, %c0_16], %25 {strides = array<i32>} : memref<21x800xf32, #tpu.memory_space<vmem>>, vector<1x799xf32>,
    %27 = vector.extract_strided_slice %3 {offsets = [0, 2], sizes = [1, 798], strides = [1, 1]} : vector<1x800xf32> to vector<1x798xf32>
    %c12 = arith.constant 12 : index
    %c0_17 = arith.constant 0 : index
    %28 = vector.load %arg16[%c12, %c0_17] : memref<21x800xf32, #tpu.memory_space<vmem>>, vector<1x798xf32>
    tpu.vector_store %arg16[%c12, %c0_17], %27 {strides = array<i32>} : memref<21x800xf32, #tpu.memory_space<vmem>>, vector<1x798xf32>,
    %29 = vector.extract_strided_slice %3 {offsets = [0, 3], sizes = [1, 797], strides = [1, 1]} : vector<1x800xf32> to vector<1x797xf32>
    %c13 = arith.constant 13 : index
    %c0_18 = arith.constant 0 : index
    %30 = vector.load %arg16[%c13, %c0_18] : memref<21x800xf32, #tpu.memory_space<vmem>>, vector<1x797xf32>
    tpu.vector_store %arg16[%c13, %c0_18], %29 {strides = array<i32>} : memref<21x800xf32, #tpu.memory_space<vmem>>, vector<1x797xf32>,
    %31 = vector.extract_strided_slice %3 {offsets = [0, 4], sizes = [1, 796], strides = [1, 1]} : vector<1x800xf32> to vector<1x796xf32>
    %c14 = arith.constant 14 : index
    %c0_19 = arith.constant 0 : index
    %32 = vector.load %arg16[%c14, %c0_19] : memref<21x800xf32, #tpu.memory_space<vmem>>, vector<1x796xf32>
    tpu.vector_store %arg16[%c14, %c0_19], %31 {strides = array<i32>} : memref<21x800xf32, #tpu.memory_space<vmem>>, vector<1x796xf32>,
    %33 = vector.extract_strided_slice %3 {offsets = [0, 5], sizes = [1, 795], strides = [1, 1]} : vector<1x800xf32> to vector<1x795xf32>
    %c15 = arith.constant 15 : index
    %c0_20 = arith.constant 0 : index
    %34 = vector.load %arg16[%c15, %c0_20] : memref<21x800xf32, #tpu.memory_space<vmem>>, vector<1x795xf32>
    tpu.vector_store %arg16[%c15, %c0_20], %33 {strides = array<i32>} : memref<21x800xf32, #tpu.memory_space<vmem>>, vector<1x795xf32>,
    %35 = vector.extract_strided_slice %3 {offsets = [0, 6], sizes = [1, 794], strides = [1, 1]} : vector<1x800xf32> to vector<1x794xf32>
    %c16 = arith.constant 16 : index
    %c0_21 = arith.constant 0 : index
    %36 = vector.load %arg16[%c16, %c0_21] : memref<21x800xf32, #tpu.memory_space<vmem>>, vector<1x794xf32>
    tpu.vector_store %arg16[%c16, %c0_21], %35 {strides = array<i32>} : memref<21x800xf32, #tpu.memory_space<vmem>>, vector<1x794xf32>,
    %37 = vector.extract_strided_slice %3 {offsets = [0, 7], sizes = [1, 793], strides = [1, 1]} : vector<1x800xf32> to vector<1x793xf32>
    %c17 = arith.constant 17 : index
    %c0_22 = arith.constant 0 : index
    %38 = vector.load %arg16[%c17, %c0_22] : memref<21x800xf32, #tpu.memory_space<vmem>>, vector<1x793xf32>
    tpu.vector_store %arg16[%c17, %c0_22], %37 {strides = array<i32>} : memref<21x800xf32, #tpu.memory_space<vmem>>, vector<1x793xf32>,
    %39 = vector.extract_strided_slice %3 {offsets = [0, 8], sizes = [1, 792], strides = [1, 1]} : vector<1x800xf32> to vector<1x792xf32>
    %c18 = arith.constant 18 : index
    %c0_23 = arith.constant 0 : index
    %40 = vector.load %arg16[%c18, %c0_23] : memref<21x800xf32, #tpu.memory_space<vmem>>, vector<1x792xf32>
    tpu.vector_store %arg16[%c18, %c0_23], %39 {strides = array<i32>} : memref<21x800xf32, #tpu.memory_space<vmem>>, vector<1x792xf32>,
    %41 = vector.extract_strided_slice %3 {offsets = [0, 9], sizes = [1, 791], strides = [1, 1]} : vector<1x800xf32> to vector<1x791xf32>
    %c19 = arith.constant 19 : index
    %c0_24 = arith.constant 0 : index
    %42 = vector.load %arg16[%c19, %c0_24] : memref<21x800xf32, #tpu.memory_space<vmem>>, vector<1x791xf32>
    tpu.vector_store %arg16[%c19, %c0_24], %41 {strides = array<i32>} : memref<21x800xf32, #tpu.memory_space<vmem>>, vector<1x791xf32>,
    %43 = vector.extract_strided_slice %3 {offsets = [0, 10], sizes = [1, 790], strides = [1, 1]} : vector<1x800xf32> to vector<1x790xf32>
    %c20 = arith.constant 20 : index
    %c0_25 = arith.constant 0 : index
    %44 = vector.load %arg16[%c20, %c0_25] : memref<21x800xf32, #tpu.memory_space<vmem>>, vector<1x790xf32>
    tpu.vector_store %arg16[%c20, %c0_25], %43 {strides = array<i32>} : memref<21x800xf32, #tpu.memory_space<vmem>>, vector<1x790xf32>,
    %c0_26 = arith.constant 0 : index
    %c0_27 = arith.constant 0 : index
    %45 = vector.load %arg2[%c0_26, %c0_27] : memref<64x21xf32, #tpu.memory_space<vmem>>, vector<64x21xf32>
    %c0_28 = arith.constant 0 : index
    %c0_29 = arith.constant 0 : index
    %46 = vector.load %arg16[%c0_28, %c0_29] : memref<21x800xf32, #tpu.memory_space<vmem>>, vector<21x800xf32>
    %cst_30 = arith.constant dense<0.000000e+00> : vector<64x800xf32>
    %47 = tpu.matmul %45, %46, %cst_30 {dimension_numbers = #tpu.dot_dimension_numbers<[1], [0], [0], [1], [0, 0, 1, 1], [], []>} : vector<64x21xf32>, vector<21x800xf32>, vector<64x800xf32> -> vector<64x800xf32>
    %48 = vector.extract_strided_slice %47 {offsets = [0, 0], sizes = [32, 800], strides = [1, 1]} : vector<64x800xf32> to vector<32x800xf32>
    %49 = vector.extract_strided_slice %47 {offsets = [32, 0], sizes = [32, 800], strides = [1, 1]} : vector<64x800xf32> to vector<32x800xf32>
    %50 = arith.mulf %48, %48 : vector<32x800xf32>
    %51 = arith.mulf %49, %49 : vector<32x800xf32>
    %52 = arith.addf %50, %51 : vector<32x800xf32>
    %c0_31 = arith.constant 0 : index
    %c0_32 = arith.constant 0 : index
    %53 = vector.load %arg3[%c0_31, %c0_32] : memref<800x100xf32, #tpu.memory_space<vmem>>, vector<800x100xf32>
    %cst_33 = arith.constant dense<0.000000e+00> : vector<32x100xf32>
    %54 = tpu.matmul %52, %53, %cst_33 {dimension_numbers = #tpu.dot_dimension_numbers<[1], [0], [0], [1], [0, 0, 1, 1], [], []>} : vector<32x800xf32>, vector<800x100xf32>, vector<32x100xf32> -> vector<32x100xf32>
    %cst_34 = arith.constant 0.000000e+00 : f32
    %55 = vector.broadcast %cst_34 : f32 to vector<32x128xf32>
    %c0_35 = arith.constant 0 : index
    %c0_36 = arith.constant 0 : index
    %56 = vector.load %arg17[%c0_35, %c0_36] : memref<32x128xf32, #tpu.memory_space<vmem>>, vector<32x128xf32>
    tpu.vector_store %arg17[%c0_35, %c0_36], %55 {strides = array<i32>} : memref<32x128xf32, #tpu.memory_space<vmem>>, vector<32x128xf32>,
    %c0_37 = arith.constant 0 : index
    %c0_38 = arith.constant 0 : index
    %57 = vector.load %arg17[%c0_37, %c0_38] : memref<32x128xf32, #tpu.memory_space<vmem>>, vector<32x100xf32>
    tpu.vector_store %arg17[%c0_37, %c0_38], %54 {strides = array<i32>} : memref<32x128xf32, #tpu.memory_space<vmem>>, vector<32x100xf32>,
    %c0_39 = arith.constant 0 : index
    %c0_40 = arith.constant 0 : index
    %58 = vector.load %arg17[%c0_39, %c0_40] : memref<32x128xf32, #tpu.memory_space<vmem>>, vector<32x128xf32>
    %c0_41 = arith.constant 0 : index
    %c0_42 = arith.constant 0 : index
    %c0_43 = arith.constant 0 : index
    %59 = vector.load %arg4[%c0_41, %c0_42, %c0_43] : memref<3x32x2xf32, #tpu.memory_space<vmem>>, vector<1x32x2xf32>
    %60 = vector.shape_cast %59 : vector<1x32x2xf32> to vector<32x2xf32>
    %61 = vector.extract_strided_slice %60 {offsets = [0, 0], sizes = [32, 1], strides = [1, 1]} : vector<32x2xf32> to vector<32x1xf32>
    %62 = vector.extract_strided_slice %58 {offsets = [0, 0], sizes = [32, 99], strides = [1, 1]} : vector<32x128xf32> to vector<32x99xf32>
    %63 = vector.broadcast %61 : vector<32x1xf32> to vector<32x99xf32>
    %64 = arith.mulf %63, %62 : vector<32x99xf32>
    %65 = vector.extract_strided_slice %60 {offsets = [0, 1], sizes = [32, 1], strides = [1, 1]} : vector<32x2xf32> to vector<32x1xf32>
    %66 = vector.extract_strided_slice %58 {offsets = [0, 1], sizes = [32, 99], strides = [1, 1]} : vector<32x128xf32> to vector<32x99xf32>
    %67 = vector.broadcast %65 : vector<32x1xf32> to vector<32x99xf32>
    %68 = arith.mulf %67, %66 : vector<32x99xf32>
    %69 = arith.addf %64, %68 : vector<32x99xf32>
    %c0_44 = arith.constant 0 : index
    %c0_45 = arith.constant 0 : index
    %c0_46 = arith.constant 0 : index
    %70 = vector.load %arg5[%c0_44, %c0_45, %c0_46] : memref<3x32x32xf32, #tpu.memory_space<vmem>>, vector<1x32x32xf32>
    %71 = vector.shape_cast %70 : vector<1x32x32xf32> to vector<32x32xf32>
    %cst_47 = arith.constant dense<0.000000e+00> : vector<32x99xf32>
    %72 = tpu.matmul %71, %69, %cst_47 {dimension_numbers = #tpu.dot_dimension_numbers<[1], [0], [0], [1], [0, 0, 1, 1], [], []>} : vector<32x32xf32>, vector<32x99xf32>, vector<32x99xf32> -> vector<32x99xf32>
    %cst_48 = arith.constant 0.000000e+00 : f32
    %73 = vector.broadcast %cst_48 : f32 to vector<32x99xf32>
    %74 = arith.maximumf %69, %73 : vector<32x99xf32>
    %c0_49 = arith.constant 0 : index
    %c0_50 = arith.constant 0 : index
    %c0_51 = arith.constant 0 : index
    %75 = vector.load %arg6[%c0_49, %c0_50, %c0_51] : memref<3x32x32xf32, #tpu.memory_space<vmem>>, vector<1x32x32xf32>
    %76 = vector.shape_cast %75 : vector<1x32x32xf32> to vector<32x32xf32>
    %cst_52 = arith.constant dense<0.000000e+00> : vector<32x99xf32>
    %77 = tpu.matmul %76, %74, %cst_52 {dimension_numbers = #tpu.dot_dimension_numbers<[1], [0], [0], [1], [0, 0, 1, 1], [], []>} : vector<32x32xf32>, vector<32x99xf32>, vector<32x99xf32> -> vector<32x99xf32>
    %78 = vector.extract_strided_slice %54 {offsets = [0, 1], sizes = [32, 99], strides = [1, 1]} : vector<32x100xf32> to vector<32x99xf32>
    %79 = arith.addf %77, %78 : vector<32x99xf32>
    %cst_53 = arith.constant 0.000000e+00 : f32
    %80 = vector.broadcast %cst_53 : f32 to vector<32x128xf32>
    %c0_54 = arith.constant 0 : index
    %c0_55 = arith.constant 0 : index
    %81 = vector.load %arg17[%c0_54, %c0_55] : memref<32x128xf32, #tpu.memory_space<vmem>>, vector<32x128xf32>
    tpu.vector_store %arg17[%c0_54, %c0_55], %80 {strides = array<i32>} : memref<32x128xf32, #tpu.memory_space<vmem>>, vector<32x128xf32>,
    %c0_56 = arith.constant 0 : index
    %c1_57 = arith.constant 1 : index
    %82 = vector.load %arg17[%c0_56, %c1_57] : memref<32x128xf32, #tpu.memory_space<vmem>>, vector<32x99xf32>
    tpu.vector_store %arg17[%c0_56, %c1_57], %79 {strides = array<i32>} : memref<32x128xf32, #tpu.memory_space<vmem>>, vector<32x99xf32>,
    %c0_58 = arith.constant 0 : index
    %c0_59 = arith.constant 0 : index
    %83 = vector.load %arg17[%c0_58, %c0_59] : memref<32x128xf32, #tpu.memory_space<vmem>>, vector<32x128xf32>
    %c1_60 = arith.constant 1 : index
    %c0_61 = arith.constant 0 : index
    %c0_62 = arith.constant 0 : index
    %84 = vector.load %arg4[%c1_60, %c0_61, %c0_62] : memref<3x32x2xf32, #tpu.memory_space<vmem>>, vector<1x32x2xf32>
    %85 = vector.shape_cast %84 : vector<1x32x2xf32> to vector<32x2xf32>
    %86 = vector.extract_strided_slice %85 {offsets = [0, 0], sizes = [32, 1], strides = [1, 1]} : vector<32x2xf32> to vector<32x1xf32>
    %87 = vector.extract_strided_slice %83 {offsets = [0, 0], sizes = [32, 99], strides = [1, 1]} : vector<32x128xf32> to vector<32x99xf32>
    %88 = vector.broadcast %86 : vector<32x1xf32> to vector<32x99xf32>
    %89 = arith.mulf %88, %87 : vector<32x99xf32>
    %90 = vector.extract_strided_slice %85 {offsets = [0, 1], sizes = [32, 1], strides = [1, 1]} : vector<32x2xf32> to vector<32x1xf32>
    %91 = vector.extract_strided_slice %83 {offsets = [0, 2], sizes = [32, 99], strides = [1, 1]} : vector<32x128xf32> to vector<32x99xf32>
    %92 = vector.broadcast %90 : vector<32x1xf32> to vector<32x99xf32>
    %93 = arith.mulf %92, %91 : vector<32x99xf32>
    %94 = arith.addf %89, %93 : vector<32x99xf32>
    %c1_63 = arith.constant 1 : index
    %c0_64 = arith.constant 0 : index
    %c0_65 = arith.constant 0 : index
    %95 = vector.load %arg5[%c1_63, %c0_64, %c0_65] : memref<3x32x32xf32, #tpu.memory_space<vmem>>, vector<1x32x32xf32>
    %96 = vector.shape_cast %95 : vector<1x32x32xf32> to vector<32x32xf32>
    %cst_66 = arith.constant dense<0.000000e+00> : vector<32x99xf32>
    %97 = tpu.matmul %96, %94, %cst_66 {dimension_numbers = #tpu.dot_dimension_numbers<[1], [0], [0], [1], [0, 0, 1, 1], [], []>} : vector<32x32xf32>, vector<32x99xf32>, vector<32x99xf32> -> vector<32x99xf32>
    %cst_67 = arith.constant 0.000000e+00 : f32
    %98 = vector.broadcast %cst_67 : f32 to vector<32x99xf32>
    %99 = arith.maximumf %94, %98 : vector<32x99xf32>
    %c1_68 = arith.constant 1 : index
    %c0_69 = arith.constant 0 : index
    %c0_70 = arith.constant 0 : index
    %100 = vector.load %arg6[%c1_68, %c0_69, %c0_70] : memref<3x32x32xf32, #tpu.memory_space<vmem>>, vector<1x32x32xf32>
    %101 = vector.shape_cast %100 : vector<1x32x32xf32> to vector<32x32xf32>
    %cst_71 = arith.constant dense<0.000000e+00> : vector<32x99xf32>
    %102 = tpu.matmul %101, %99, %cst_71 {dimension_numbers = #tpu.dot_dimension_numbers<[1], [0], [0], [1], [0, 0, 1, 1], [], []>} : vector<32x32xf32>, vector<32x99xf32>, vector<32x99xf32> -> vector<32x99xf32>
    %103 = arith.addf %102, %79 : vector<32x99xf32>
    %cst_72 = arith.constant 0.000000e+00 : f32
    %104 = vector.broadcast %cst_72 : f32 to vector<32x128xf32>
    %c0_73 = arith.constant 0 : index
    %c0_74 = arith.constant 0 : index
    %105 = vector.load %arg17[%c0_73, %c0_74] : memref<32x128xf32, #tpu.memory_space<vmem>>, vector<32x128xf32>
    tpu.vector_store %arg17[%c0_73, %c0_74], %104 {strides = array<i32>} : memref<32x128xf32, #tpu.memory_space<vmem>>, vector<32x128xf32>,
    %c0_75 = arith.constant 0 : index
    %c2_76 = arith.constant 2 : index
    %106 = vector.load %arg17[%c0_75, %c2_76] : memref<32x128xf32, #tpu.memory_space<vmem>>, vector<32x99xf32>
    tpu.vector_store %arg17[%c0_75, %c2_76], %103 {strides = array<i32>} : memref<32x128xf32, #tpu.memory_space<vmem>>, vector<32x99xf32>,
    %c0_77 = arith.constant 0 : index
    %c0_78 = arith.constant 0 : index
    %107 = vector.load %arg17[%c0_77, %c0_78] : memref<32x128xf32, #tpu.memory_space<vmem>>, vector<32x128xf32>
    %c2_79 = arith.constant 2 : index
    %c0_80 = arith.constant 0 : index
    %c0_81 = arith.constant 0 : index
    %108 = vector.load %arg4[%c2_79, %c0_80, %c0_81] : memref<3x32x2xf32, #tpu.memory_space<vmem>>, vector<1x32x2xf32>
    %109 = vector.shape_cast %108 : vector<1x32x2xf32> to vector<32x2xf32>
    %110 = vector.extract_strided_slice %109 {offsets = [0, 0], sizes = [32, 1], strides = [1, 1]} : vector<32x2xf32> to vector<32x1xf32>
    %111 = vector.extract_strided_slice %107 {offsets = [0, 0], sizes = [32, 99], strides = [1, 1]} : vector<32x128xf32> to vector<32x99xf32>
    %112 = vector.broadcast %110 : vector<32x1xf32> to vector<32x99xf32>
    %113 = arith.mulf %112, %111 : vector<32x99xf32>
    %114 = vector.extract_strided_slice %109 {offsets = [0, 1], sizes = [32, 1], strides = [1, 1]} : vector<32x2xf32> to vector<32x1xf32>
    %115 = vector.extract_strided_slice %107 {offsets = [0, 4], sizes = [32, 99], strides = [1, 1]} : vector<32x128xf32> to vector<32x99xf32>
    %116 = vector.broadcast %114 : vector<32x1xf32> to vector<32x99xf32>
    %117 = arith.mulf %116, %115 : vector<32x99xf32>
    %118 = arith.addf %113, %117 : vector<32x99xf32>
    %c2_82 = arith.constant 2 : index
    %c0_83 = arith.constant 0 : index
    %c0_84 = arith.constant 0 : index
    %119 = vector.load %arg5[%c2_82, %c0_83, %c0_84] : memref<3x32x32xf32, #tpu.memory_space<vmem>>, vector<1x32x32xf32>
    %120 = vector.shape_cast %119 : vector<1x32x32xf32> to vector<32x32xf32>
    %cst_85 = arith.constant dense<0.000000e+00> : vector<32x99xf32>
    %121 = tpu.matmul %120, %118, %cst_85 {dimension_numbers = #tpu.dot_dimension_numbers<[1], [0], [0], [1], [0, 0, 1, 1], [], []>} : vector<32x32xf32>, vector<32x99xf32>, vector<32x99xf32> -> vector<32x99xf32>
    %122 = arith.addf %72, %97 : vector<32x99xf32>
    %123 = arith.addf %122, %121 : vector<32x99xf32>
    %cst_86 = arith.constant dense<0.000000e+00> : vector<32xf32>
    %124 = vector.multi_reduction <add>, %123, %cst_86 [1] : vector<32x99xf32> to vector<32xf32>
    %125 = vector.shape_cast %124 : vector<32xf32> to vector<32x1xf32>
    %cst_87 = arith.constant 9.900000e+01 : f32
    %126 = vector.broadcast %cst_87 : f32 to vector<32x1xf32>
    %127 = arith.divf %125, %126 : vector<32x1xf32>
    %c0_88 = arith.constant 0 : index
    %c0_89 = arith.constant 0 : index
    %128 = vector.load %arg7[%c0_88, %c0_89] : memref<8x32xf32, #tpu.memory_space<vmem>>, vector<8x32xf32>
    %cst_90 = arith.constant dense<0.000000e+00> : vector<8x1xf32>
    %129 = tpu.matmul %128, %127, %cst_90 {dimension_numbers = #tpu.dot_dimension_numbers<[1], [0], [0], [1], [0, 0, 1, 1], [], []>} : vector<8x32xf32>, vector<32x1xf32>, vector<8x1xf32> -> vector<8x1xf32>
    %c0_91 = arith.constant 0 : index
    %c0_92 = arith.constant 0 : index
    %130 = vector.load %arg8[%c0_91, %c0_92] : memref<8x1xf32, #tpu.memory_space<vmem>>, vector<8x1xf32>
    %131 = arith.addf %129, %130 : vector<8x1xf32>
    %cst_93 = arith.constant 0.000000e+00 : f32
    %132 = vector.broadcast %cst_93 : f32 to vector<8x1xf32>
    %133 = arith.maximumf %131, %132 : vector<8x1xf32>
    %c0_94 = arith.constant 0 : index
    %c0_95 = arith.constant 0 : index
    %134 = vector.load %arg9[%c0_94, %c0_95] : memref<32x8xf32, #tpu.memory_space<vmem>>, vector<32x8xf32>
    %cst_96 = arith.constant dense<0.000000e+00> : vector<32x1xf32>
    %135 = tpu.matmul %134, %133, %cst_96 {dimension_numbers = #tpu.dot_dimension_numbers<[1], [0], [0], [1], [0, 0, 1, 1], [], []>} : vector<32x8xf32>, vector<8x1xf32>, vector<32x1xf32> -> vector<32x1xf32>
    %c0_97 = arith.constant 0 : index
    %c0_98 = arith.constant 0 : index
    %136 = vector.load %arg10[%c0_97, %c0_98] : memref<32x1xf32, #tpu.memory_space<vmem>>, vector<32x1xf32>
    %137 = arith.addf %135, %136 : vector<32x1xf32>
    %138 = arith.negf %137 : vector<32x1xf32>
    %139 = math.exp %138 : vector<32x1xf32>
    %cst_99 = arith.constant 1.000000e+00 : f32
    %140 = vector.broadcast %cst_99 : f32 to vector<32x1xf32>
    %141 = arith.addf %140, %139 : vector<32x1xf32>
    %142 = arith.divf %140, %141 : vector<32x1xf32>
    %143 = vector.broadcast %142 : vector<32x1xf32> to vector<32x99xf32>
    %144 = arith.mulf %123, %143 : vector<32x99xf32>
    %c0_100 = arith.constant 0 : index
    %c0_101 = arith.constant 0 : index
    %145 = vector.load %arg11[%c0_100, %c0_101] : memref<32x32xf32, #tpu.memory_space<vmem>>, vector<32x32xf32>
    %cst_102 = arith.constant dense<0.000000e+00> : vector<32x99xf32>
    %146 = tpu.matmul %145, %144, %cst_102 {dimension_numbers = #tpu.dot_dimension_numbers<[1], [0], [0], [1], [0, 0, 1, 1], [], []>} : vector<32x32xf32>, vector<32x99xf32>, vector<32x99xf32> -> vector<32x99xf32>
    %cst_103 = arith.constant 0.000000e+00 : f32
    %147 = vector.broadcast %cst_103 : f32 to vector<32x99xf32>
    %148 = arith.maximumf %146, %147 : vector<32x99xf32>
    %c0_104 = arith.constant 0 : index
    %c0_105 = arith.constant 0 : index
    %149 = vector.load %arg12[%c0_104, %c0_105] : memref<32x32xf32, #tpu.memory_space<vmem>>, vector<32x32xf32>
    %cst_106 = arith.constant dense<0.000000e+00> : vector<32x99xf32>
    %150 = tpu.matmul %149, %148, %cst_106 {dimension_numbers = #tpu.dot_dimension_numbers<[1], [0], [0], [1], [0, 0, 1, 1], [], []>} : vector<32x32xf32>, vector<32x99xf32>, vector<32x99xf32> -> vector<32x99xf32>
    %151 = arith.addf %144, %150 : vector<32x99xf32>
    %cst_107 = arith.constant 0.000000e+00 : f32
    %152 = vector.broadcast %cst_107 : f32 to vector<32x99xf32>
    %153 = arith.maximumf %151, %152 : vector<32x99xf32>
    %cst_108 = arith.constant dense<0.000000e+00> : vector<32xf32>
    %154 = vector.multi_reduction <add>, %153, %cst_108 [1] : vector<32x99xf32> to vector<32xf32>
    %155 = vector.shape_cast %154 : vector<32xf32> to vector<32x1xf32>
    %cst_109 = arith.constant 9.900000e+01 : f32
    %156 = vector.broadcast %cst_109 : f32 to vector<32x1xf32>
    %157 = arith.divf %155, %156 : vector<32x1xf32>
    %c0_110 = arith.constant 0 : index
    %c0_111 = arith.constant 0 : index
    %158 = vector.load %arg13[%c0_110, %c0_111] : memref<2x32xf32, #tpu.memory_space<vmem>>, vector<2x32xf32>
    %cst_112 = arith.constant dense<0.000000e+00> : vector<2x1xf32>
    %159 = tpu.matmul %158, %157, %cst_112 {dimension_numbers = #tpu.dot_dimension_numbers<[1], [0], [0], [1], [0, 0, 1, 1], [], []>} : vector<2x32xf32>, vector<32x1xf32>, vector<2x1xf32> -> vector<2x1xf32>
    %c0_113 = arith.constant 0 : index
    %c0_114 = arith.constant 0 : index
    %160 = vector.load %arg14[%c0_113, %c0_114] : memref<2x1xf32, #tpu.memory_space<vmem>>, vector<2x1xf32>
    %161 = arith.addf %159, %160 : vector<2x1xf32>
    %c0_115 = arith.constant 0 : index
    %c0_116 = arith.constant 0 : index
    %c0_117 = arith.constant 0 : index
    %162 = vector.load %arg15[%c0_115, %c0_116, %c0_117] : memref<1x2x1xf32, #tpu.memory_space<vmem>>, vector<1x2x1xf32>
    %163 = vector.shape_cast %162 : vector<1x2x1xf32> to vector<2x1xf32>
    %164 = vector.shape_cast %161 : vector<2x1xf32> to vector<1x2x1xf32>
    tpu.vector_store %arg15[%c0_115, %c0_116, %c0_117], %164 {strides = array<i32>} : memref<1x2x1xf32, #tpu.memory_space<vmem>>, vector<1x2x1xf32>,
    return
  }
  func.func @transform_0(%arg0: i32) -> (i32, i32, i32) {
    %c0_i32 = arith.constant 0 : i32
    %c0_i32_0 = arith.constant 0 : i32
    %c0_i32_1 = arith.constant 0 : i32
    return %arg0, %c0_i32, %c0_i32_0 : i32, i32, i32
  }
  func.func @transform_1(%arg0: i32) -> (i32, i32) {
    %c0_i32 = arith.constant 0 : i32
    %c0_i32_0 = arith.constant 0 : i32
    %c0_i32_1 = arith.constant 0 : i32
    return %c0_i32, %c0_i32_0 : i32, i32
  }
  func.func @transform_2(%arg0: i32) -> (i32, i32) {
    %c0_i32 = arith.constant 0 : i32
    %c0_i32_0 = arith.constant 0 : i32
    %c0_i32_1 = arith.constant 0 : i32
    return %c0_i32, %c0_i32_0 : i32, i32
  }
  func.func @transform_3(%arg0: i32) -> (i32, i32, i32) {
    %c0_i32 = arith.constant 0 : i32
    %c0_i32_0 = arith.constant 0 : i32
    %c0_i32_1 = arith.constant 0 : i32
    %c0_i32_2 = arith.constant 0 : i32
    return %c0_i32, %c0_i32_0, %c0_i32_1 : i32, i32, i32
  }
  func.func @transform_4(%arg0: i32) -> (i32, i32, i32) {
    %c0_i32 = arith.constant 0 : i32
    %c0_i32_0 = arith.constant 0 : i32
    %c0_i32_1 = arith.constant 0 : i32
    %c0_i32_2 = arith.constant 0 : i32
    return %c0_i32, %c0_i32_0, %c0_i32_1 : i32, i32, i32
  }
  func.func @transform_5(%arg0: i32) -> (i32, i32, i32) {
    %c0_i32 = arith.constant 0 : i32
    %c0_i32_0 = arith.constant 0 : i32
    %c0_i32_1 = arith.constant 0 : i32
    %c0_i32_2 = arith.constant 0 : i32
    return %c0_i32, %c0_i32_0, %c0_i32_1 : i32, i32, i32
  }
  func.func @transform_6(%arg0: i32) -> (i32, i32) {
    %c0_i32 = arith.constant 0 : i32
    %c0_i32_0 = arith.constant 0 : i32
    %c0_i32_1 = arith.constant 0 : i32
    return %c0_i32, %c0_i32_0 : i32, i32
  }
  func.func @transform_7(%arg0: i32) -> (i32, i32) {
    %c0_i32 = arith.constant 0 : i32
    %c0_i32_0 = arith.constant 0 : i32
    %c0_i32_1 = arith.constant 0 : i32
    return %c0_i32, %c0_i32_0 : i32, i32
  }
  func.func @transform_8(%arg0: i32) -> (i32, i32) {
    %c0_i32 = arith.constant 0 : i32
    %c0_i32_0 = arith.constant 0 : i32
    %c0_i32_1 = arith.constant 0 : i32
    return %c0_i32, %c0_i32_0 : i32, i32
  }
  func.func @transform_9(%arg0: i32) -> (i32, i32) {
    %c0_i32 = arith.constant 0 : i32
    %c0_i32_0 = arith.constant 0 : i32
    %c0_i32_1 = arith.constant 0 : i32
    return %c0_i32, %c0_i32_0 : i32, i32
  }
  func.func @transform_10(%arg0: i32) -> (i32, i32) {
    %c0_i32 = arith.constant 0 : i32
    %c0_i32_0 = arith.constant 0 : i32
    %c0_i32_1 = arith.constant 0 : i32
    return %c0_i32, %c0_i32_0 : i32, i32
  }
  func.func @transform_11(%arg0: i32) -> (i32, i32) {
    %c0_i32 = arith.constant 0 : i32
    %c0_i32_0 = arith.constant 0 : i32
    %c0_i32_1 = arith.constant 0 : i32
    return %c0_i32, %c0_i32_0 : i32, i32
  }
  func.func @transform_12(%arg0: i32) -> (i32, i32) {
    %c0_i32 = arith.constant 0 : i32
    %c0_i32_0 = arith.constant 0 : i32
    %c0_i32_1 = arith.constant 0 : i32
    return %c0_i32, %c0_i32_0 : i32, i32
  }
  func.func @transform_13(%arg0: i32) -> (i32, i32) {
    %c0_i32 = arith.constant 0 : i32
    %c0_i32_0 = arith.constant 0 : i32
    %c0_i32_1 = arith.constant 0 : i32
    return %c0_i32, %c0_i32_0 : i32, i32
  }
  func.func @transform_14(%arg0: i32) -> (i32, i32, i32) {
    %c0_i32 = arith.constant 0 : i32
    %c0_i32_0 = arith.constant 0 : i32
    %c0_i32_1 = arith.constant 0 : i32
    return %arg0, %c0_i32, %c0_i32_0 : i32, i32, i32
  }
}

</mosaic_0001>

<llo_original>
// kernel: _lambda_.1
$region0: #{_lambda_.1}
  #allocation0 [shape = 'u32[]', space=smem, size = 0x4, offset = 0x4, fixed_abs, tag = 'smem constant byte address 0x4 - core index']
  #allocation1 [shape = 'u32[72,128]{1,0:T(1,128)}', space=vmem, size = 0x9000, scoped, tag = 'internal scratch']
  #allocation2 [shape = 'f32[21,800]{1,0:T(8,128)}', space=vmem, size = 0x15000, scoped, tag = 'scratch operand']
  #allocation3 [shape = 'f32[32,128]{1,0:T(8,128)}', space=vmem, size = 0x4000, scoped, tag = 'scratch operand']
  %s0 = inlined_call_operand.vmem [shape: f32[2,1,800], index: 0, kind: input, shape index: {}]
  %s1 = inlined_call_operand.vmem [shape: f32[64,21], index: 1, kind: input, shape index: {}]
  %s2 = inlined_call_operand.hbm [shape: f32[800,100], index: 2, kind: input, shape index: {}]
  %s3 = inlined_call_operand.hbm [shape: f32[3,32,2], index: 3, kind: input, shape index: {}]
  %s4 = inlined_call_operand.hbm [shape: f32[3,32,32], index: 4, kind: input, shape index: {}]
  %s5 = inlined_call_operand.hbm [shape: f32[3,32,32], index: 5, kind: input, shape index: {}]
  %s6 = inlined_call_operand.vmem [shape: f32[8,32], index: 6, kind: input, shape index: {}]
  %s7 = inlined_call_operand.vmem [shape: f32[8,1], index: 7, kind: input, shape index: {}]
  %s8 = inlined_call_operand.hbm [shape: f32[32,8], index: 8, kind: input, shape index: {}]
  %s9 = inlined_call_operand.vmem [shape: f32[32,1], index: 9, kind: input, shape index: {}]
  %s10 = inlined_call_operand.hbm [shape: f32[32,32], index: 10, kind: input, shape index: {}]
  %s11 = inlined_call_operand.hbm [shape: f32[32,32], index: 11, kind: input, shape index: {}]
  %s12 = inlined_call_operand.vmem [shape: f32[2,32], index: 12, kind: input, shape index: {}]
  %s13 = inlined_call_operand.vmem [shape: f32[2,1], index: 13, kind: input, shape index: {}]
  %s14 = inlined_call_operand.vmem [shape: f32[2,2,1], index: 14, kind: output, shape index: {}]
  %s15 = sld [smem:[#allocation0]]
  $region117: #{_lambda_.1} parent=0
    _
  %s17 = ssub.s32 1, %s15
  %s18 = scalar_select 0, %s17, %s15
  $region1: #{_lambda_.1} parent=0
    #allocation4 [shape = 'u8[409600]{0}', space=vmem, size = 0x64000, scoped, tag = 'input window, operand 2, single buffered']
    #allocation5 [shape = 's32[2]{0}', space=sflag, size = 0x8, scoped, tag = 'scoped memory for _lambda_.1']
    #allocation6 [shape = 'u8[49152]{0}', space=vmem, size = 0xc000, scoped, tag = 'input window, operand 3, single buffered']
    #allocation7 [shape = 's32[1]{0}', space=sflag, size = 0x4, scoped, tag = 'scoped memory for _lambda_.1']
    #allocation8 [shape = 'u8[49152]{0}', space=vmem, size = 0xc000, scoped, tag = 'input window, operand 4, single buffered']
    #allocation9 [shape = 'u8[49152]{0}', space=vmem, size = 0xc000, scoped, tag = 'input window, operand 5, single buffered']
    #allocation10 [shape = 's32[1]{0}', space=sflag, size = 0x4, scoped, tag = 'scoped memory for _lambda_.1']
    #allocation11 [shape = 'u8[16384]{0}', space=vmem, size = 0x4000, scoped, tag = 'input window, operand 8, single buffered']
    #allocation12 [shape = 'u8[16384]{0}', space=vmem, size = 0x4000, scoped, tag = 'input window, operand 10, single buffered']
    #allocation13 [shape = 's32[1]{0}', space=sflag, size = 0x4, scoped, tag = 'scoped memory for _lambda_.1']
    #allocation14 [shape = 'u8[16384]{0}', space=vmem, size = 0x4000, scoped, tag = 'input window, operand 11, single buffered']
    %19 = vsyncpa [#allocation5], 0
    %20 = vsyncpa [#allocation7], 0
    %21 = vsyncpa [#allocation10], 0
    %22 = vsyncpa [#allocation13], 0
    loop: start=0, step=1, limit=4
    $region2: #{_lambda_.1} parent=1 // loop_pre_header
      _
    $region3: #{_lambda_.1} parent=1 // loop_header
      %s24 = sphi 0, %s28
      %p25 = scmp.ge.s32.totalorder %s24, 4
      %s34 = sphi 0, %s36
      %s37 = sphi 0, %s34
      %s38 = sphi 0, %s37
      %s54 = sphi 0, %s38
      %s58 = sphi 0, %s58
      %s60 = sphi 0, %s58
      %s61 = sphi 0, %s60
      %s75 = sphi 0, %s61
      %s79 = sphi 0, %s79
      %s81 = sphi 0, %s79
      %s82 = sphi 0, %s81
      %s96 = sphi 0, %s82
      %s100 = sphi 0, %s100
      %s102 = sphi 0, %s100
      %s103 = sphi 0, %s102
      %s117 = sphi 0, %s103
      %s121 = sphi 0, %s121
      %s123 = sphi 0, %s121
      %s124 = sphi 0, %s123
      %s138 = sphi 0, %s124
      %s142 = sphi 0, %s142
      %s144 = sphi 0, %s142
      %s145 = sphi 0, %s144
      %s159 = sphi 0, %s145
      %s163 = sphi 0, %s163
      %s165 = sphi 0, %s163
      %s166 = sphi 0, %s165
      %s180 = sphi 0, %s166
      %s184 = sphi 0, %s184
      %s186 = sphi 0, %s184
      %s187 = sphi 0, %s186
      %s201 = sphi 0, %s187
      %s205 = sphi 0, %s205
      %s207 = sphi 0, %s205
      %s208 = sphi 0, %s207
      %s222 = sphi 0, %s208
      %s226 = sphi 0, %s226
      %s228 = sphi 0, %s226
      %s229 = sphi 0, %s228
      %s243 = sphi 0, %s229
      %s247 = sphi 0, %s247
      %s249 = sphi 0, %s247
      %s250 = sphi 0, %s249
      %s264 = sphi 0, %s250
      %s268 = sphi 0, %s268
      %s270 = sphi 0, %s268
      %s271 = sphi 0, %s270
      %s285 = sphi 0, %s271
      %s289 = sphi 0, %s289
      %s291 = sphi 0, %s289
      %s292 = sphi 0, %s291
      %s306 = sphi 0, %s292
      %s310 = sphi 0, %s310
      %s312 = sphi 0, %s310
      %s313 = sphi 0, %s312
      %s327 = sphi 0, %s313
      %s333 = sphi 0, %s335
      %s336 = sphi 0, %s333
      %s337 = sphi 0, %s336
      %s353 = sphi 0, %s337
    $region4: #{_lambda_.1} parent=1 // loop_header_branch
      %27 = sbr.rel (%p25) target = $region8
    $region5: #{_lambda_.1} parent=1 // loop_body
      %s29 = ssub.s32 %s24, 1
      %s30 = ssub.s32 %s24, 2
      %s31 = sadd.s32 %s24, 1
      %s32 = ssub.s32 %s24, %s31
      %p33 = scmp.eq.s32.totalorder %s32, 0
      %s35 = sadd.s32 %s34, 1
      %s36 = scalar_select %p33, %s34, %s35
      %p39 = pneg %p33
      %p40 = scmp.eq.s32.totalorder %s24, 1
      %p41 = por %p39, %p40
      %p42 = scmp.ne.s32.totalorder %s34, %s37
      %p43 = scmp.eq.s32.totalorder %s24, 0
      %p44 = por %p42, %p43
      %p45 = scmp.ne.s32.totalorder %s34, %s37
      %p46 = scmp.eq.s32.totalorder %s29, 1
      %p47 = por %p45, %p46
      %p48 = scmp.ne.s32.totalorder %s37, %s38
      %p49 = scmp.eq.s32.totalorder %s29, 0
      %p50 = por %p48, %p49
      %p51 = scmp.ne.s32.totalorder %s37, %s38
      %p52 = scmp.eq.s32.totalorder %s30, 1
      %p53 = por %p51, %p52
      %p55 = scmp.ne.s32.totalorder %s38, %s54
      %p56 = scmp.eq.s32.totalorder %s30, 0
      %p57 = por %p55, %p56
      %s59 = sadd.s32 %s58, 1
      %p62 = scmp.eq.s32.totalorder %s24, 1
      %p63 = scmp.ne.s32.totalorder %s58, %s60
      %p64 = scmp.eq.s32.totalorder %s24, 0
      %p65 = por %p63, %p64
      %p66 = scmp.ne.s32.totalorder %s58, %s60
      %p67 = scmp.eq.s32.totalorder %s29, 1
      %p68 = por %p66, %p67
      %p69 = scmp.ne.s32.totalorder %s60, %s61
      %p70 = scmp.eq.s32.totalorder %s29, 0
      %p71 = por %p69, %p70
      %p72 = scmp.ne.s32.totalorder %s60, %s61
      %p73 = scmp.eq.s32.totalorder %s30, 1
      %p74 = por %p72, %p73
      %p76 = scmp.ne.s32.totalorder %s61, %s75
      %p77 = scmp.eq.s32.totalorder %s30, 0
      %p78 = por %p76, %p77
      %s80 = sadd.s32 %s79, 1
      %p83 = scmp.eq.s32.totalorder %s24, 1
      %p84 = scmp.ne.s32.totalorder %s79, %s81
      %p85 = scmp.eq.s32.totalorder %s24, 0
      %p86 = por %p84, %p85
      %p87 = scmp.ne.s32.totalorder %s79, %s81
      %p88 = scmp.eq.s32.totalorder %s29, 1
      %p89 = por %p87, %p88
      %p90 = scmp.ne.s32.totalorder %s81, %s82
      %p91 = scmp.eq.s32.totalorder %s29, 0
      %p92 = por %p90, %p91
      %p93 = scmp.ne.s32.totalorder %s81, %s82
      %p94 = scmp.eq.s32.totalorder %s30, 1
      %p95 = por %p93, %p94
      %p97 = scmp.ne.s32.totalorder %s82, %s96
      %p98 = scmp.eq.s32.totalorder %s30, 0
      %p99 = por %p97, %p98
      %s101 = sadd.s32 %s100, 1
      %p104 = scmp.eq.s32.totalorder %s24, 1
      %p105 = scmp.ne.s32.totalorder %s100, %s102
      %p106 = scmp.eq.s32.totalorder %s24, 0
      %p107 = por %p105, %p106
      %p108 = scmp.ne.s32.totalorder %s100, %s102
      %p109 = scmp.eq.s32.totalorder %s29, 1
      %p110 = por %p108, %p109
      %p111 = scmp.ne.s32.totalorder %s102, %s103
      %p112 = scmp.eq.s32.totalorder %s29, 0
      %p113 = por %p111, %p112
      %p114 = scmp.ne.s32.totalorder %s102, %s103
      %p115 = scmp.eq.s32.totalorder %s30, 1
      %p116 = por %p114, %p115
      %p118 = scmp.ne.s32.totalorder %s103, %s117
      %p119 = scmp.eq.s32.totalorder %s30, 0
      %p120 = por %p118, %p119
      %s122 = sadd.s32 %s121, 1
      %p125 = scmp.eq.s32.totalorder %s24, 1
      %p126 = scmp.ne.s32.totalorder %s121, %s123
      %p127 = scmp.eq.s32.totalorder %s24, 0
      %p128 = por %p126, %p127
      %p129 = scmp.ne.s32.totalorder %s121, %s123
      %p130 = scmp.eq.s32.totalorder %s29, 1
      %p131 = por %p129, %p130
      %p132 = scmp.ne.s32.totalorder %s123, %s124
      %p133 = scmp.eq.s32.totalorder %s29, 0
      %p134 = por %p132, %p133
      %p135 = scmp.ne.s32.totalorder %s123, %s124
      %p136 = scmp.eq.s32.totalorder %s30, 1
      %p137 = por %p135, %p136
      %p139 = scmp.ne.s32.totalorder %s124, %s138
      %p140 = scmp.eq.s32.totalorder %s30, 0
      %p141 = por %p139, %p140
      %s143 = sadd.s32 %s142, 1
      %p146 = scmp.eq.s32.totalorder %s24, 1
      %p147 = scmp.ne.s32.totalorder %s142, %s144
      %p148 = scmp.eq.s32.totalorder %s24, 0
      %p149 = por %p147, %p148
      %p150 = scmp.ne.s32.totalorder %s142, %s144
      %p151 = scmp.eq.s32.totalorder %s29, 1
      %p152 = por %p150, %p151
      %p153 = scmp.ne.s32.totalorder %s144, %s145
      %p154 = scmp.eq.s32.totalorder %s29, 0
      %p155 = por %p153, %p154
      %p156 = scmp.ne.s32.totalorder %s144, %s145
      %p157 = scmp.eq.s32.totalorder %s30, 1
      %p158 = por %p156, %p157
      %p160 = scmp.ne.s32.totalorder %s145, %s159
      %p161 = scmp.eq.s32.totalorder %s30, 0
      %p162 = por %p160, %p161
      %s164 = sadd.s32 %s163, 1
      %p167 = scmp.eq.s32.totalorder %s24, 1
      %p168 = scmp.ne.s32.totalorder %s163, %s165
      %p169 = scmp.eq.s32.totalorder %s24, 0
      %p170 = por %p168, %p169
      %p171 = scmp.ne.s32.totalorder %s163, %s165
      %p172 = scmp.eq.s32.totalorder %s29, 1
      %p173 = por %p171, %p172
      %p174 = scmp.ne.s32.totalorder %s165, %s166
      %p175 = scmp.eq.s32.totalorder %s29, 0
      %p176 = por %p174, %p175
      %p177 = scmp.ne.s32.totalorder %s165, %s166
      %p178 = scmp.eq.s32.totalorder %s30, 1
      %p179 = por %p177, %p178
      %p181 = scmp.ne.s32.totalorder %s166, %s180
      %p182 = scmp.eq.s32.totalorder %s30, 0
      %p183 = por %p181, %p182
      %s185 = sadd.s32 %s184, 1
      %p188 = scmp.eq.s32.totalorder %s24, 1
      %p189 = scmp.ne.s32.totalorder %s184, %s186
      %p190 = scmp.eq.s32.totalorder %s24, 0
      %p191 = por %p189, %p190
      %p192 = scmp.ne.s32.totalorder %s184, %s186
      %p193 = scmp.eq.s32.totalorder %s29, 1
      %p194 = por %p192, %p193
      %p195 = scmp.ne.s32.totalorder %s186, %s187
      %p196 = scmp.eq.s32.totalorder %s29, 0
      %p197 = por %p195, %p196
      %p198 = scmp.ne.s32.totalorder %s186, %s187
      %p199 = scmp.eq.s32.totalorder %s30, 1
      %p200 = por %p198, %p199
      %p202 = scmp.ne.s32.totalorder %s187, %s201
      %p203 = scmp.eq.s32.totalorder %s30, 0
      %p204 = por %p202, %p203
      %s206 = sadd.s32 %s205, 1
      %p209 = scmp.eq.s32.totalorder %s24, 1
      %p210 = scmp.ne.s32.totalorder %s205, %s207
      %p211 = scmp.eq.s32.totalorder %s24, 0
      %p212 = por %p210, %p211
      %p213 = scmp.ne.s32.totalorder %s205, %s207
      %p214 = scmp.eq.s32.totalorder %s29, 1
      %p215 = por %p213, %p214
      %p216 = scmp.ne.s32.totalorder %s207, %s208
      %p217 = scmp.eq.s32.totalorder %s29, 0
      %p218 = por %p216, %p217
      %p219 = scmp.ne.s32.totalorder %s207, %s208
      %p220 = scmp.eq.s32.totalorder %s30, 1
      %p221 = por %p219, %p220
      %p223 = scmp.ne.s32.totalorder %s208, %s222
      %p224 = scmp.eq.s32.totalorder %s30, 0
      %p225 = por %p223, %p224
      %s227 = sadd.s32 %s226, 1
      %p230 = scmp.eq.s32.totalorder %s24, 1
      %p231 = scmp.ne.s32.totalorder %s226, %s228
      %p232 = scmp.eq.s32.totalorder %s24, 0
      %p233 = por %p231, %p232
      %p234 = scmp.ne.s32.totalorder %s226, %s228
      %p235 = scmp.eq.s32.totalorder %s29, 1
      %p236 = por %p234, %p235
      %p237 = scmp.ne.s32.totalorder %s228, %s229
      %p238 = scmp.eq.s32.totalorder %s29, 0
      %p239 = por %p237, %p238
      %p240 = scmp.ne.s32.totalorder %s228, %s229
      %p241 = scmp.eq.s32.totalorder %s30, 1
      %p242 = por %p240, %p241
      %p244 = scmp.ne.s32.totalorder %s229, %s243
      %p245 = scmp.eq.s32.totalorder %s30, 0
      %p246 = por %p244, %p245
      %s248 = sadd.s32 %s247, 1
      %p251 = scmp.eq.s32.totalorder %s24, 1
      %p252 = scmp.ne.s32.totalorder %s247, %s249
      %p253 = scmp.eq.s32.totalorder %s24, 0
      %p254 = por %p252, %p253
      %p255 = scmp.ne.s32.totalorder %s247, %s249
      %p256 = scmp.eq.s32.totalorder %s29, 1
      %p257 = por %p255, %p256
      %p258 = scmp.ne.s32.totalorder %s249, %s250
      %p259 = scmp.eq.s32.totalorder %s29, 0
      %p260 = por %p258, %p259
      %p261 = scmp.ne.s32.totalorder %s249, %s250
      %p262 = scmp.eq.s32.totalorder %s30, 1
      %p263 = por %p261, %p262
      %p265 = scmp.ne.s32.totalorder %s250, %s264
      %p266 = scmp.eq.s32.totalorder %s30, 0
      %p267 = por %p265, %p266
      %s269 = sadd.s32 %s268, 1
      %p272 = scmp.eq.s32.totalorder %s24, 1
      %p273 = scmp.ne.s32.totalorder %s268, %s270
      %p274 = scmp.eq.s32.totalorder %s24, 0
      %p275 = por %p273, %p274
      %p276 = scmp.ne.s32.totalorder %s268, %s270
      %p277 = scmp.eq.s32.totalorder %s29, 1
      %p278 = por %p276, %p277
      %p279 = scmp.ne.s32.totalorder %s270, %s271
      %p280 = scmp.eq.s32.totalorder %s29, 0
      %p281 = por %p279, %p280
      %p282 = scmp.ne.s32.totalorder %s270, %s271
      %p283 = scmp.eq.s32.totalorder %s30, 1
      %p284 = por %p282, %p283
      %p286 = scmp.ne.s32.totalorder %s271, %s285
      %p287 = scmp.eq.s32.totalorder %s30, 0
      %p288 = por %p286, %p287
      %s290 = sadd.s32 %s289, 1
      %p293 = scmp.eq.s32.totalorder %s24, 1
      %p294 = scmp.ne.s32.totalorder %s289, %s291
      %p295 = scmp.eq.s32.totalorder %s24, 0
      %p296 = por %p294, %p295
      %p297 = scmp.ne.s32.totalorder %s289, %s291
      %p298 = scmp.eq.s32.totalorder %s29, 1
      %p299 = por %p297, %p298
      %p300 = scmp.ne.s32.totalorder %s291, %s292
      %p301 = scmp.eq.s32.totalorder %s29, 0
      %p302 = por %p300, %p301
      %p303 = scmp.ne.s32.totalorder %s291, %s292
      %p304 = scmp.eq.s32.totalorder %s30, 1
      %p305 = por %p303, %p304
      %p307 = scmp.ne.s32.totalorder %s292, %s306
      %p308 = scmp.eq.s32.totalorder %s30, 0
      %p309 = por %p307, %p308
      %s311 = sadd.s32 %s310, 1
      %p314 = scmp.eq.s32.totalorder %s24, 1
      %p315 = scmp.ne.s32.totalorder %s310, %s312
      %p316 = scmp.eq.s32.totalorder %s24, 0
      %p317 = por %p315, %p316
      %p318 = scmp.ne.s32.totalorder %s310, %s312
      %p319 = scmp.eq.s32.totalorder %s29, 1
      %p320 = por %p318, %p319
      %p321 = scmp.ne.s32.totalorder %s312, %s313
      %p322 = scmp.eq.s32.totalorder %s29, 0
      %p323 = por %p321, %p322
      %p324 = scmp.ne.s32.totalorder %s312, %s313
      %p325 = scmp.eq.s32.totalorder %s30, 1
      %p326 = por %p324, %p325
      %p328 = scmp.ne.s32.totalorder %s313, %s327
      %p329 = scmp.eq.s32.totalorder %s30, 0
      %p330 = por %p328, %p329
      %s331 = ssub.s32 %s24, %s31
      %p332 = scmp.eq.s32.totalorder %s331, 0
      %s334 = sadd.s32 %s333, 1
      %s335 = scalar_select %p332, %s333, %s334
      %p338 = pneg %p332
      %p339 = scmp.eq.s32.totalorder %s24, 1
      %p340 = por %p338, %p339
      %p341 = scmp.ne.s32.totalorder %s333, %s336
      %p342 = scmp.eq.s32.totalorder %s24, 0
      %p343 = por %p341, %p342
      %p344 = scmp.ne.s32.totalorder %s333, %s336
      %p345 = scmp.eq.s32.totalorder %s29, 1
      %p346 = por %p344, %p345
      %p347 = scmp.ne.s32.totalorder %s336, %s337
      %p348 = scmp.eq.s32.totalorder %s29, 0
      %p349 = por %p347, %p348
      %p350 = scmp.ne.s32.totalorder %s336, %s337
      %p351 = scmp.eq.s32.totalorder %s30, 1
      %p352 = por %p350, %p351
      %p354 = scmp.ne.s32.totalorder %s337, %s353
      %p355 = scmp.eq.s32.totalorder %s30, 0
      %p356 = por %p354, %p355
      %p357 = scmp.le.s32.totalorder 1, %s24
      %p358 = scmp.lt.s32.totalorder %s24, 3
      %p359 = pnand %p357, %p358
      %p360 = pneg %p359
      // Predicated region
      $region9: #{_lambda_.1} parent=5 // pred_check
        _
      $region10: #{_lambda_.1} parent=5 // pred_check_branch
        %362 = sbr.rel (%p359) target = $region12
      $region11: #{_lambda_.1} parent=5 // pred_region
        %s363 = ssub.s32 %s24, 1
        // Predicated region
        $region13: #{_lambda_.1} parent=11 // pred_check
          %p364 = pneg %p71
        $region14: #{_lambda_.1} parent=11 // pred_check_branch
          %366 = sbr.rel (%p364) target = $region16
        $region15: #{_lambda_.1} parent=11 // pred_region
          _
        $region16: #{_lambda_.1} parent=11 // pred_fallthru
          _
        // Predicated region
        $region17: #{_lambda_.1} parent=11 // pred_check
          %p367 = pneg %p92
        $region18: #{_lambda_.1} parent=11 // pred_check_branch
          %369 = sbr.rel (%p367) target = $region20
        $region19: #{_lambda_.1} parent=11 // pred_region
          %371 = vsyncadd [#allocation5], 0
          %s372 = sshll.u32 %s2, 4
          %s373 = int_to_ptr.hbm [resolvable:$true] %s372
          %s374 = sshll.u32 [#allocation4], 4
          %s375 = int_to_ptr.vmem [resolvable:$true] %s374
          %380 = dma.hbm_to_vmem [thread:$0]  %s373, 12800, %s375, [#allocation5], 128, 128, 8
        $region20: #{_lambda_.1} parent=11 // pred_fallthru
          _
        // Predicated region
        $region21: #{_lambda_.1} parent=11 // pred_check
          %p381 = pneg %p113
        $region22: #{_lambda_.1} parent=11 // pred_check_branch
          %383 = sbr.rel (%p381) target = $region24
        $region23: #{_lambda_.1} parent=11 // pred_region
          %385 = vsyncadd [#allocation7], 0
          %s386 = sshll.u32 %s3, 4
          %s387 = int_to_ptr.hbm [resolvable:$true] %s386
          %s388 = sshll.u32 [#allocation6], 4
          %s389 = int_to_ptr.vmem [resolvable:$true] %s388
          %394 = dma.hbm_to_vmem [thread:$0]  %s387, 1536, %s389, [#allocation7], 128, 128, 8
        $region24: #{_lambda_.1} parent=11 // pred_fallthru
          _
        // Predicated region
        $region25: #{_lambda_.1} parent=11 // pred_check
          %p395 = pneg %p134
        $region26: #{_lambda_.1} parent=11 // pred_check_branch
          %397 = sbr.rel (%p395) target = $region28
        $region27: #{_lambda_.1} parent=11 // pred_region
          %399 = vsyncadd [#allocation7], 0
          %s400 = sshll.u32 %s4, 4
          %s401 = int_to_ptr.hbm [resolvable:$true] %s400
          %s402 = sshll.u32 [#allocation8], 4
          %s403 = int_to_ptr.vmem [resolvable:$true] %s402
          %408 = dma.hbm_to_vmem [thread:$0]  %s401, 1536, %s403, [#allocation7], 128, 128, 8
        $region28: #{_lambda_.1} parent=11 // pred_fallthru
          _
        // Predicated region
        $region29: #{_lambda_.1} parent=11 // pred_check
          %p409 = pneg %p155
        $region30: #{_lambda_.1} parent=11 // pred_check_branch
          %411 = sbr.rel (%p409) target = $region32
        $region31: #{_lambda_.1} parent=11 // pred_region
          %413 = vsyncadd [#allocation10], 0
          %s414 = sshll.u32 %s5, 4
          %s415 = int_to_ptr.hbm [resolvable:$true] %s414
          %s416 = sshll.u32 [#allocation9], 4
          %s417 = int_to_ptr.vmem [resolvable:$true] %s416
          %422 = dma.hbm_to_vmem [thread:$0]  %s415, 1536, %s417, [#allocation10], 128, 128, 8
        $region32: #{_lambda_.1} parent=11 // pred_fallthru
          _
        // Predicated region
        $region33: #{_lambda_.1} parent=11 // pred_check
          %p423 = pneg %p176
        $region34: #{_lambda_.1} parent=11 // pred_check_branch
          %425 = sbr.rel (%p423) target = $region36
        $region35: #{_lambda_.1} parent=11 // pred_region
          _
        $region36: #{_lambda_.1} parent=11 // pred_fallthru
          _
        // Predicated region
        $region37: #{_lambda_.1} parent=11 // pred_check
          %p426 = pneg %p197
        $region38: #{_lambda_.1} parent=11 // pred_check_branch
          %428 = sbr.rel (%p426) target = $region40
        $region39: #{_lambda_.1} parent=11 // pred_region
          _
        $region40: #{_lambda_.1} parent=11 // pred_fallthru
          _
        // Predicated region
        $region41: #{_lambda_.1} parent=11 // pred_check
          %p429 = pneg %p218
        $region42: #{_lambda_.1} parent=11 // pred_check_branch
          %431 = sbr.rel (%p429) target = $region44
        $region43: #{_lambda_.1} parent=11 // pred_region
          %433 = vsyncadd [#allocation10], 0
          %s434 = sshll.u32 %s8, 4
          %s435 = int_to_ptr.hbm [resolvable:$true] %s434
          %s436 = sshll.u32 [#allocation11], 4
          %s437 = int_to_ptr.vmem [resolvable:$true] %s436
          %442 = dma.hbm_to_vmem [thread:$0]  %s435, 512, %s437, [#allocation10], 128, 128, 8
        $region44: #{_lambda_.1} parent=11 // pred_fallthru
          _
        // Predicated region
        $region45: #{_lambda_.1} parent=11 // pred_check
          %p443 = pneg %p239
        $region46: #{_lambda_.1} parent=11 // pred_check_branch
          %445 = sbr.rel (%p443) target = $region48
        $region47: #{_lambda_.1} parent=11 // pred_region
          _
        $region48: #{_lambda_.1} parent=11 // pred_fallthru
          _
        // Predicated region
        $region49: #{_lambda_.1} parent=11 // pred_check
          %p446 = pneg %p260
        $region50: #{_lambda_.1} parent=11 // pred_check_branch
          %448 = sbr.rel (%p446) target = $region52
        $region51: #{_lambda_.1} parent=11 // pred_region
          %450 = vsyncadd [#allocation13], 0
          %s451 = sshll.u32 %s10, 4
          %s452 = int_to_ptr.hbm [resolvable:$true] %s451
          %s453 = sshll.u32 [#allocation12], 4
          %s454 = int_to_ptr.vmem [resolvable:$true] %s453
          %459 = dma.hbm_to_vmem [thread:$0]  %s452, 512, %s454, [#allocation13], 128, 128, 8
        $region52: #{_lambda_.1} parent=11 // pred_fallthru
          _
        // Predicated region
        $region53: #{_lambda_.1} parent=11 // pred_check
          %p460 = pneg %p281
        $region54: #{_lambda_.1} parent=11 // pred_check_branch
          %462 = sbr.rel (%p460) target = $region56
        $region55: #{_lambda_.1} parent=11 // pred_region
          %464 = vsyncadd [#allocation13], 0
          %s465 = sshll.u32 %s11, 4
          %s466 = int_to_ptr.hbm [resolvable:$true] %s465
          %s467 = sshll.u32 [#allocation14], 4
          %s468 = int_to_ptr.vmem [resolvable:$true] %s467
          %473 = dma.hbm_to_vmem [thread:$0]  %s466, 512, %s468, [#allocation13], 128, 128, 8
        $region56: #{_lambda_.1} parent=11 // pred_fallthru
          _
        // Predicated region
        $region57: #{_lambda_.1} parent=11 // pred_check
          %p474 = pneg %p302
        $region58: #{_lambda_.1} parent=11 // pred_check_branch
          %476 = sbr.rel (%p474) target = $region60
        $region59: #{_lambda_.1} parent=11 // pred_region
          _
        $region60: #{_lambda_.1} parent=11 // pred_fallthru
          _
        // Predicated region
        $region61: #{_lambda_.1} parent=11 // pred_check
          %p477 = pneg %p323
        $region62: #{_lambda_.1} parent=11 // pred_check_branch
          %479 = sbr.rel (%p477) target = $region64
        $region63: #{_lambda_.1} parent=11 // pred_region
          _
        $region64: #{_lambda_.1} parent=11 // pred_fallthru
          _
      $region12: #{_lambda_.1} parent=5 // pred_fallthru
        _
      %p480 = scmp.lt.s32.totalorder %s24, 2
      // Predicated region
      $region65: #{_lambda_.1} parent=5 // pred_check
        %p481 = pneg %p480
      $region66: #{_lambda_.1} parent=5 // pred_check_branch
        %483 = sbr.rel (%p481) target = $region68
      $region67: #{_lambda_.1} parent=5 // pred_region
        // Predicated region
        $region69: #{_lambda_.1} parent=67 // pred_check
          %p484 = pneg %p44
        $region70: #{_lambda_.1} parent=67 // pred_check_branch
          %486 = sbr.rel (%p484) target = $region72
        $region71: #{_lambda_.1} parent=67 // pred_region
          %p487 = scmp.lt.s32.totalorder %s24, 1
          %s488 = scalar_select %p487, %s24, 1
          %s489 = smul.addr %s488, 7
          %s490 = scalar_lea.vmem %s0, %s489
        $region72: #{_lambda_.1} parent=67 // pred_fallthru
          _
      $region68: #{_lambda_.1} parent=5 // pred_fallthru
        _
      %p491 = scmp.le.s32.totalorder 1, %s24
      %p492 = scmp.lt.s32.totalorder %s24, 3
      %p493 = pnand %p491, %p492
      %p494 = pneg %p493
      // Predicated region
      $region73: #{_lambda_.1} parent=5 // pred_check
        _
      $region74: #{_lambda_.1} parent=5 // pred_check_branch
        %496 = sbr.rel (%p493) target = $region76
      $region75: #{_lambda_.1} parent=5 // pred_region
        %s497 = ssub.s32 %s24, 1
        // Predicated region
        $region77: #{_lambda_.1} parent=75 // pred_check
          %p498 = pneg %p92
        $region78: #{_lambda_.1} parent=75 // pred_check_branch
          %500 = sbr.rel (%p498) target = $region80
        $region79: #{_lambda_.1} parent=75 // pred_region
          %502 = dma.done [#allocation5], 12800
        $region80: #{_lambda_.1} parent=75 // pred_fallthru
          _
        // Predicated region
        $region81: #{_lambda_.1} parent=75 // pred_check
          %p503 = pneg %p113
        $region82: #{_lambda_.1} parent=75 // pred_check_branch
          %505 = sbr.rel (%p503) target = $region84
        $region83: #{_lambda_.1} parent=75 // pred_region
          %507 = dma.done [#allocation7], 1536
        $region84: #{_lambda_.1} parent=75 // pred_fallthru
          _
        // Predicated region
        $region85: #{_lambda_.1} parent=75 // pred_check
          %p508 = pneg %p134
        $region86: #{_lambda_.1} parent=75 // pred_check_branch
          %510 = sbr.rel (%p508) target = $region88
        $region87: #{_lambda_.1} parent=75 // pred_region
          %512 = dma.done [#allocation7], 1536
        $region88: #{_lambda_.1} parent=75 // pred_fallthru
          _
        // Predicated region
        $region89: #{_lambda_.1} parent=75 // pred_check
          %p513 = pneg %p155
        $region90: #{_lambda_.1} parent=75 // pred_check_branch
          %515 = sbr.rel (%p513) target = $region92
        $region91: #{_lambda_.1} parent=75 // pred_region
          %517 = dma.done [#allocation10], 1536
        $region92: #{_lambda_.1} parent=75 // pred_fallthru
          _
        // Predicated region
        $region93: #{_lambda_.1} parent=75 // pred_check
          %p518 = pneg %p218
        $region94: #{_lambda_.1} parent=75 // pred_check_branch
          %520 = sbr.rel (%p518) target = $region96
        $region95: #{_lambda_.1} parent=75 // pred_region
          %522 = dma.done [#allocation10], 512
        $region96: #{_lambda_.1} parent=75 // pred_fallthru
          _
        // Predicated region
        $region97: #{_lambda_.1} parent=75 // pred_check
          %p523 = pneg %p260
        $region98: #{_lambda_.1} parent=75 // pred_check_branch
          %525 = sbr.rel (%p523) target = $region100
        $region99: #{_lambda_.1} parent=75 // pred_region
          %527 = dma.done [#allocation13], 512
        $region100: #{_lambda_.1} parent=75 // pred_fallthru
          _
        // Predicated region
        $region101: #{_lambda_.1} parent=75 // pred_check
          %p528 = pneg %p281
        $region102: #{_lambda_.1} parent=75 // pred_check_branch
          %530 = sbr.rel (%p528) target = $region104
        $region103: #{_lambda_.1} parent=75 // pred_region
          %532 = dma.done [#allocation13], 512
        $region104: #{_lambda_.1} parent=75 // pred_fallthru
          _
        %p533 = scmp.lt.s32.totalorder %s29, 1
        %s534 = scalar_select %p533, %s29, 1
        %s535 = smul.addr %s534, 7
        %s536 = scalar_lea.vmem %s0, %s535
        %p537 = pneg %p50
        %p538 = pneg %p47
        %p539 = pneg %p71
        %p540 = pneg %p68
        %p541 = pneg %p92
        %p542 = pneg %p89
        %p543 = pneg %p113
        %p544 = pneg %p110
        %p545 = pneg %p134
        %p546 = pneg %p131
        %p547 = pneg %p155
        %p548 = pneg %p152
        %p549 = pneg %p176
        %p550 = pneg %p173
        %p551 = pneg %p197
        %p552 = pneg %p194
        %p553 = pneg %p218
        %p554 = pneg %p215
        %p555 = pneg %p239
        %p556 = pneg %p236
        %p557 = pneg %p260
        %p558 = pneg %p257
        %p559 = pneg %p281
        %p560 = pneg %p278
        %p561 = pneg %p302
        %p562 = pneg %p299
        %p563 = pneg %p323
        %p564 = pneg %p320
        %p565 = pneg %p349
        %p566 = pneg %p346
        %p567 = scmp.lt.s32.totalorder %s29, 1
        %s568 = scalar_select %p567, %s29, 1
        %s569 = smul.addr %s568, 2
        %s570 = scalar_lea.vmem %s14, %s569
        %p571 = scmp.lt.s32.totalorder %s29, 1
        %s572 = scalar_select %p571, %s29, 1
        %s573 = smul.addr %s572, 7
        %s574 = scalar_lea.vmem %s0, %s573
        %p575 = scmp.lt.s32.totalorder %s29, 1
        %s576 = scalar_select %p575, %s29, 1
        %s577 = smul.addr %s576, 2
        %s578 = scalar_lea.vmem %s14, %s577
        %579 = vst [vmem:[#allocation2] sm:$0xff] 0.0
        %580 = vst [vmem:[#allocation2 + $0x8] sm:$0xff] 0.0
        %581 = vst [vmem:[#allocation2 + $0x10] sm:$0xff] 0.0
        %582 = vst [vmem:[#allocation2 + $0x18] sm:$0xff] 0.0
        %583 = vst [vmem:[#allocation2 + $0x20] sm:$0xff] 0.0
        %584 = vst [vmem:[#allocation2 + $0x28] sm:$0xff] 0.0
        %vm585 = vcmask 261120
        %586 = vst.msk [vmem:[#allocation2 + $0x30] sm:$0xff] %vm585, 0.0
        %587 = vst [vmem:[#allocation2 + $0x38] sm:$0xff] 0.0
        %588 = vst [vmem:[#allocation2 + $0x40] sm:$0xff] 0.0
        %589 = vst [vmem:[#allocation2 + $0x48] sm:$0xff] 0.0
        %590 = vst [vmem:[#allocation2 + $0x50] sm:$0xff] 0.0
        %591 = vst [vmem:[#allocation2 + $0x58] sm:$0xff] 0.0
        %592 = vst [vmem:[#allocation2 + $0x60] sm:$0xff] 0.0
        %593 = vst.msk [vmem:[#allocation2 + $0x68] sm:$0xff] %vm585, 0.0
        %594 = vst [vmem:[#allocation2 + $0x70] sm:$0x1f] 0.0
        %595 = vst [vmem:[#allocation2 + $0x78] sm:$0x1f] 0.0
        %596 = vst [vmem:[#allocation2 + $0x80] sm:$0x1f] 0.0
        %597 = vst [vmem:[#allocation2 + $0x88] sm:$0x1f] 0.0
        %598 = vst [vmem:[#allocation2 + $0x90] sm:$0x1f] 0.0
        %599 = vst [vmem:[#allocation2 + $0x98] sm:$0x1f] 0.0
        %vm600 = vcmask 258048
        %601 = vst.msk [vmem:[#allocation2 + $0xa0] sm:$0x1f] %vm600, 0.0
        %v602 = vld [vmem:[%s574] sm:$0x7f]
        %604 = vrot.lane.b32.xlu0 %v602, 10
        %v605 = vpop.permute.xlu0 %604
        %v606 = vrot.slane %v605, 7
        %vm607 = vcmask 80896
        %v608 = vsel %vm607, %v606, %v605
        %v610 = vlaneseq
        %vm611 = vcmp.ge.s32.totalorder %v610, 10
        %vm612 = vcmp.lt.s32.totalorder %v610, 800
        %vm613 = vmand %vm611, %vm612
        %614 = vst.msk [vmem:[#allocation2] ss:$8 sm:$0xf] %vm613, %v608
        %615 = vst.msk [vmem:[#allocation2] ss:$8 sm:$0x70] %vm613, %v608
        %616 = vrot.lane.b32.xlu0 %v602, 9
        %v617 = vpop.permute.xlu0 %616
        %v618 = vrot.slane %v617, 7
        %vm619 = vcmask 72704
        %v620 = vsel %vm619, %v618, %v617
        %vm622 = vcmp.ge.s32.totalorder %v610, 9
        %vm623 = vmand %vm622, %vm612
        %s624 = scalar_lea.vmem [#allocation2], 1
        %625 = vst.msk [vmem:[%s624] ss:$8 sm:$0xf] %vm623, %v620
        %626 = vst.msk [vmem:[%s624] ss:$8 sm:$0x70] %vm623, %v620
        %627 = vrot.lane.b32.xlu0 %v602, 8
        %v628 = vpop.permute.xlu0 %627
        %v629 = vrot.slane %v628, 7
        %vm630 = vcmask 64512
        %v631 = vsel %vm630, %v629, %v628
        %vm633 = vcmp.ge.s32.totalorder %v610, 8
        %vm634 = vmand %vm633, %vm612
        %s635 = scalar_lea.vmem [#allocation2], 2
        %636 = vst.msk [vmem:[%s635] ss:$8 sm:$0xf] %vm634, %v631
        %637 = vst.msk [vmem:[%s635] ss:$8 sm:$0x70] %vm634, %v631
        %638 = vrot.lane.b32.xlu0 %v602, 7
        %v639 = vpop.permute.xlu0 %638
        %v640 = vrot.slane %v639, 7
        %vm641 = vcmask 56320
        %v642 = vsel %vm641, %v640, %v639
        %vm644 = vcmp.ge.s32.totalorder %v610, 7
        %vm645 = vmand %vm644, %vm612
        %s646 = scalar_lea.vmem [#allocation2], 3
        %647 = vst.msk [vmem:[%s646] ss:$8 sm:$0xf] %vm645, %v642
        %648 = vst.msk [vmem:[%s646] ss:$8 sm:$0x70] %vm645, %v642
        %649 = vrot.lane.b32.xlu0 %v602, 6
        %v650 = vpop.permute.xlu0 %649
        %v651 = vrot.slane %v650, 7
        %vm652 = vcmask 48128
        %v653 = vsel %vm652, %v651, %v650
        %vm655 = vcmp.ge.s32.totalorder %v610, 6
        %vm656 = vmand %vm655, %vm612
        %s657 = scalar_lea.vmem [#allocation2], 4
        %658 = vst.msk [vmem:[%s657] ss:$8 sm:$0xf] %vm656, %v653
        %659 = vst.msk [vmem:[%s657] ss:$8 sm:$0x70] %vm656, %v653
        %660 = vrot.lane.b32.xlu0 %v602, 5
        %v661 = vpop.permute.xlu0 %660
        %v662 = vrot.slane %v661, 7
        %vm663 = vcmask 39936
        %v664 = vsel %vm663, %v662, %v661
        %vm666 = vcmp.ge.s32.totalorder %v610, 5
        %vm667 = vmand %vm666, %vm612
        %s668 = scalar_lea.vmem [#allocation2], 5
        %669 = vst.msk [vmem:[%s668] ss:$8 sm:$0xf] %vm667, %v664
        %670 = vst.msk [vmem:[%s668] ss:$8 sm:$0x70] %vm667, %v664
        %671 = vrot.lane.b32.xlu0 %v602, 4
        %v672 = vpop.permute.xlu0 %671
        %v673 = vrot.slane %v672, 7
        %vm674 = vcmask 31744
        %v675 = vsel %vm674, %v673, %v672
        %vm677 = vcmp.ge.s32.totalorder %v610, 4
        %vm678 = vmand %vm677, %vm612
        %s679 = scalar_lea.vmem [#allocation2], 6
        %680 = vst.msk [vmem:[%s679] ss:$8 sm:$0xf] %vm678, %v675
        %681 = vst.msk [vmem:[%s679] ss:$8 sm:$0x70] %vm678, %v675
        %682 = vrot.lane.b32.xlu0 %v602, 3
        %v683 = vpop.permute.xlu0 %682
        %v684 = vrot.slane %v683, 7
        %vm685 = vcmask 23552
        %v686 = vsel %vm685, %v684, %v683
        %vm688 = vcmp.ge.s32.totalorder %v610, 3
        %vm689 = vmand %vm688, %vm612
        %s690 = scalar_lea.vmem [#allocation2], 7
        %691 = vst.msk [vmem:[%s690] ss:$8 sm:$0xf] %vm689, %v686
        %692 = vst.msk [vmem:[%s690] ss:$8 sm:$0x70] %vm689, %v686
        %693 = vrot.lane.b32.xlu0 %v602, 2
        %v694 = vpop.permute.xlu0 %693
        %v695 = vrot.slane %v694, 7
        %vm696 = vcmask 15360
        %v697 = vsel %vm696, %v695, %v694
        %vm699 = vcmp.ge.s32.totalorder %v610, 2
        %vm700 = vmand %vm699, %vm612
        %s701 = scalar_lea.vmem [#allocation2], 56
        %702 = vst.msk [vmem:[%s701] ss:$8 sm:$0xf] %vm700, %v697
        %703 = vst.msk [vmem:[%s701] ss:$8 sm:$0x70] %vm700, %v697
        %704 = vrot.lane.b32.xlu0 %v602, 1
        %v705 = vpop.permute.xlu0 %704
        %v706 = vrot.slane %v705, 7
        %vm707 = vcmask 7168
        %v708 = vsel %vm707, %v706, %v705
        %vm710 = vcmp.ge.s32.totalorder %v610, 1
        %vm711 = vmand %vm710, %vm612
        %s712 = scalar_lea.vmem [#allocation2], 57
        %713 = vst.msk [vmem:[%s712] ss:$8 sm:$0xf] %vm711, %v708
        %714 = vst.msk [vmem:[%s712] ss:$8 sm:$0x70] %vm711, %v708
        %vm715 = vcmp.ge.s32.totalorder %v610, 0
        %vm716 = vmand %vm715, %vm612
        %s717 = scalar_lea.vmem [#allocation2], 58
        %718 = vst.msk [vmem:[%s717] ss:$8 sm:$0xf] %vm716, %v602
        %719 = vst.msk [vmem:[%s717] ss:$8 sm:$0x70] %vm716, %v602
        %720 = vrot.lane.b32.xlu0 %v602, 127
        %v721 = vpop.permute.xlu0 %720
        %v722 = vrot.slane %v721, 1
        %vm723 = vcmask 1039360
        %v724 = vsel %vm723, %v721, %v722
        %vm726 = vcmp.lt.s32.totalorder %v610, 799
        %vm727 = vmand %vm715, %vm726
        %s728 = scalar_lea.vmem [#allocation2], 59
        %729 = vst.msk [vmem:[%s728] ss:$8 sm:$0xf] %vm727, %v724
        %730 = vst.msk [vmem:[%s728] ss:$8 sm:$0x70] %vm727, %v724
        %731 = vrot.lane.b32.xlu0 %v602, 126
        %v732 = vpop.permute.xlu0 %731
        %v733 = vrot.slane %v732, 1
        %vm734 = vcmask 1031168
        %v735 = vsel %vm734, %v732, %v733
        %vm737 = vcmp.lt.s32.totalorder %v610, 798
        %vm738 = vmand %vm715, %vm737
        %s739 = scalar_lea.vmem [#allocation2], 60
        %740 = vst.msk [vmem:[%s739] ss:$8 sm:$0xf] %vm738, %v735
        %741 = vst.msk [vmem:[%s739] ss:$8 sm:$0x70] %vm738, %v735
        %742 = vrot.lane.b32.xlu0 %v602, 125
        %v743 = vpop.permute.xlu0 %742
        %v744 = vrot.slane %v743, 1
        %vm745 = vcmask 1022976
        %v746 = vsel %vm745, %v743, %v744
        %vm748 = vcmp.lt.s32.totalorder %v610, 797
        %vm749 = vmand %vm715, %vm748
        %s750 = scalar_lea.vmem [#allocation2], 61
        %751 = vst.msk [vmem:[%s750] ss:$8 sm:$0xf] %vm749, %v746
        %752 = vst.msk [vmem:[%s750] ss:$8 sm:$0x70] %vm749, %v746
        %753 = vrot.lane.b32.xlu0 %v602, 124
        %v754 = vpop.permute.xlu0 %753
        %v755 = vrot.slane %v754, 1
        %vm756 = vcmask 1014784
        %v757 = vsel %vm756, %v754, %v755
        %vm759 = vcmp.lt.s32.totalorder %v610, 796
        %vm760 = vmand %vm715, %vm759
        %s761 = scalar_lea.vmem [#allocation2], 62
        %762 = vst.msk [vmem:[%s761] ss:$8 sm:$0xf] %vm760, %v757
        %763 = vst.msk [vmem:[%s761] ss:$8 sm:$0x70] %vm760, %v757
        %764 = vrot.lane.b32.xlu0 %v602, 123
        %v765 = vpop.permute.xlu0 %764
        %v766 = vrot.slane %v765, 1
        %vm767 = vcmask 1006592
        %v768 = vsel %vm767, %v765, %v766
        %vm770 = vcmp.lt.s32.totalorder %v610, 795
        %vm771 = vmand %vm715, %vm770
        %s772 = scalar_lea.vmem [#allocation2], 63
        %773 = vst.msk [vmem:[%s772] ss:$8 sm:$0xf] %vm771, %v768
        %774 = vst.msk [vmem:[%s772] ss:$8 sm:$0x70] %vm771, %v768
        %775 = vrot.lane.b32.xlu0 %v602, 122
        %v776 = vpop.permute.xlu0 %775
        %v777 = vrot.slane %v776, 1
        %vm778 = vcmask 998400
        %v779 = vsel %vm778, %v776, %v777
        %vm781 = vcmp.lt.s32.totalorder %v610, 794
        %vm782 = vmand %vm715, %vm781
        %s783 = scalar_lea.vmem [#allocation2], 112
        %784 = vst.msk [vmem:[%s783] ss:$8 sm:$0xf] %vm782, %v779
        %785 = vst.msk [vmem:[%s783] ss:$8 sm:$0x70] %vm782, %v779
        %786 = vrot.lane.b32.xlu0 %v602, 121
        %v787 = vpop.permute.xlu0 %786
        %v788 = vrot.slane %v787, 1
        %vm789 = vcmask 990208
        %v790 = vsel %vm789, %v787, %v788
        %vm792 = vcmp.lt.s32.totalorder %v610, 793
        %vm793 = vmand %vm715, %vm792
        %s794 = scalar_lea.vmem [#allocation2], 113
        %795 = vst.msk [vmem:[%s794] ss:$8 sm:$0xf] %vm793, %v790
        %796 = vst.msk [vmem:[%s794] ss:$8 sm:$0x70] %vm793, %v790
        %797 = vrot.lane.b32.xlu0 %v602, 120
        %v798 = vpop.permute.xlu0 %797
        %v799 = vrot.slane %v798, 1
        %vm800 = vcmask 982016
        %v801 = vsel %vm800, %v798, %v799
        %vm803 = vcmp.lt.s32.totalorder %v610, 792
        %vm804 = vmand %vm715, %vm803
        %s805 = scalar_lea.vmem [#allocation2], 114
        %806 = vst.msk [vmem:[%s805] ss:$8 sm:$0xf] %vm804, %v801
        %807 = vst.msk [vmem:[%s805] ss:$8 sm:$0x70] %vm804, %v801
        %808 = vrot.lane.b32.xlu0 %v602, 119
        %v809 = vpop.permute.xlu0 %808
        %v810 = vrot.slane %v809, 1
        %vm811 = vcmask 973824
        %v812 = vsel %vm811, %v809, %v810
        %vm814 = vcmp.lt.s32.totalorder %v610, 791
        %vm815 = vmand %vm715, %vm814
        %s816 = scalar_lea.vmem [#allocation2], 115
        %817 = vst.msk [vmem:[%s816] ss:$8 sm:$0xf] %vm815, %v812
        %818 = vst.msk [vmem:[%s816] ss:$8 sm:$0x70] %vm815, %v812
        %819 = vrot.lane.b32.xlu0 %v602, 118
        %v820 = vpop.permute.xlu0 %819
        %v821 = vrot.slane %v820, 1
        %vm822 = vcmask 965632
        %v823 = vsel %vm822, %v820, %v821
        %vm825 = vcmp.lt.s32.totalorder %v610, 790
        %vm826 = vmand %vm715, %vm825
        %s827 = scalar_lea.vmem [#allocation2], 116
        %828 = vst.msk [vmem:[%s827] ss:$8 sm:$0xf] %vm826, %v823
        %829 = vst.msk [vmem:[%s827] ss:$8 sm:$0x70] %vm826, %v823
        %v830 = vld [vmem:[%s1] sm:$0xff]
        %v831 = vld [vmem:[%s1 + $0x8] sm:$0xff]
        %v832 = vld [vmem:[%s1 + $0x10] sm:$0xff]
        %v833 = vld [vmem:[%s1 + $0x18] sm:$0xff]
        %v834 = vld [vmem:[%s1 + $0x20] sm:$0xff]
        %v835 = vld [vmem:[%s1 + $0x28] sm:$0xff]
        %v836 = vld [vmem:[%s1 + $0x30] sm:$0xff]
        %v837 = vld [vmem:[%s1 + $0x38] sm:$0xff]
        %v838 = vld [vmem:[#allocation2] sm:$0xff]
        %v839 = vld [vmem:[#allocation2 + $0x8] sm:$0xff]
        %v840 = vld [vmem:[#allocation2 + $0x10] sm:$0xff]
        %v841 = vld [vmem:[#allocation2 + $0x18] sm:$0xff]
        %v842 = vld [vmem:[#allocation2 + $0x20] sm:$0xff]
        %v843 = vld [vmem:[#allocation2 + $0x28] sm:$0xff]
        %v844 = vld [vmem:[#allocation2 + $0x30] sm:$0xff]
        %v845 = vld [vmem:[#allocation2 + $0x38] sm:$0xff]
        %v846 = vld [vmem:[#allocation2 + $0x40] sm:$0xff]
        %v847 = vld [vmem:[#allocation2 + $0x48] sm:$0xff]
        %v848 = vld [vmem:[#allocation2 + $0x50] sm:$0xff]
        %v849 = vld [vmem:[#allocation2 + $0x58] sm:$0xff]
        %v850 = vld [vmem:[#allocation2 + $0x60] sm:$0xff]
        %v851 = vld [vmem:[#allocation2 + $0x68] sm:$0xff]
        %v852 = vld [vmem:[#allocation2 + $0x70] sm:$0x1f]
        %v853 = vld [vmem:[#allocation2 + $0x78] sm:$0x1f]
        %v854 = vld [vmem:[#allocation2 + $0x80] sm:$0x1f]
        %v855 = vld [vmem:[#allocation2 + $0x88] sm:$0x1f]
        %v856 = vld [vmem:[#allocation2 + $0x90] sm:$0x1f]
        %v857 = vld [vmem:[#allocation2 + $0x98] sm:$0x1f]
        %v858 = vld [vmem:[#allocation2 + $0xa0] sm:$0x1f]
        %vm859 = vcmask 171008
        %v861 = vsel %vm859, %v830, 0
        %v864 = vsel %vm859, %v831, 0
        %v867 = vsel %vm859, %v832, 0
        %v870 = vsel %vm859, %v833, 0
        %v873 = vsel %vm859, %v834, 0
        %v876 = vsel %vm859, %v835, 0
        %v879 = vsel %vm859, %v836, 0
        %v882 = vsel %vm859, %v837, 0
        %vm884 = vcmask 1044480
        %v886 = vsel %vm884, %v852, 0
        %v889 = vsel %vm884, %v853, 0
        %v892 = vsel %vm884, %v854, 0
        %v895 = vsel %vm884, %v855, 0
        %v898 = vsel %vm884, %v856, 0
        %v901 = vsel %vm884, %v857, 0
        %v904 = vsel %vm884, %v858, 0
        %906 = vmatpush.msra.mxu0 0.0
        %907 = vmatpush.msra.mxu0 0.0
        %908 = vmatpush.msra.mxu0 0.0
        %909 = vmatpush.msra.mxu0 0.0
        %910 = vmatpush.msra.mxu0 0.0
        %911 = vmatpush.msra.mxu0 0.0
        %912 = vmatpush.msra.mxu0 0.0
        %913 = vmatpush.msra.mxu0 0.0
        %914 = vmatpush.msra.mxu0 0.0
        %915 = vmatpush.msra.mxu0 0.0
        %916 = vmatpush.msra.mxu0 0.0
        %917 = vmatpush.msra.mxu0 0.0
        %918 = vmatpush.msra.mxu0 0.0
        %919 = vmatpush.msra.mxu0 %v886
        %920 = vmatpush.msra.mxu0 %v845
        %921 = vmatpush.msra.mxu0 %v838
        %922 = vmatmul.f32.gmra.mxu0 %v861
        %v923 = vpop.f32.mrf.mxu0
        %v924 = vadd.f32 0.0, %v923
        %925 = vmatmul.f32.gmra.mxu0 %v864
        %v926 = vpop.f32.mrf.mxu0
        %v927 = vadd.f32 0.0, %v926
        %928 = vmatmul.f32.gmra.mxu0 %v867
        %v929 = vpop.f32.mrf.mxu0
        %v930 = vadd.f32 0.0, %v929
        %931 = vmatmul.f32.gmra.mxu0 %v870
        %v932 = vpop.f32.mrf.mxu0
        %v933 = vadd.f32 0.0, %v932
        %934 = vmatmul.f32.gmra.mxu0 %v873
        %v935 = vpop.f32.mrf.mxu0
        %v936 = vadd.f32 0.0, %v935
        %937 = vmatmul.f32.gmra.mxu0 %v876
        %v938 = vpop.f32.mrf.mxu0
        %v939 = vadd.f32 0.0, %v938
        %940 = vmatmul.f32.gmra.mxu0 %v879
        %v941 = vpop.f32.mrf.mxu0
        %v942 = vadd.f32 0.0, %v941
        %943 = vmatmul.f32.gmra.mxu0 %v882
        %v944 = vpop.f32.mrf.mxu0
        %v945 = vadd.f32 0.0, %v944
        %946 = vdwg.mxu0
        %947 = vmatpush.msra.mxu0 0.0
        %948 = vmatpush.msra.mxu0 0.0
        %949 = vmatpush.msra.mxu0 0.0
        %950 = vmatpush.msra.mxu0 0.0
        %951 = vmatpush.msra.mxu0 0.0
        %952 = vmatpush.msra.mxu0 0.0
        %953 = vmatpush.msra.mxu0 0.0
        %954 = vmatpush.msra.mxu0 0.0
        %955 = vmatpush.msra.mxu0 0.0
        %956 = vmatpush.msra.mxu0 0.0
        %957 = vmatpush.msra.mxu0 0.0
        %958 = vmatpush.msra.mxu0 0.0
        %959 = vmatpush.msra.mxu0 0.0
        %960 = vmatpush.msra.mxu0 %v889
        %961 = vmatpush.msra.mxu0 %v846
        %962 = vmatpush.msra.mxu0 %v839
        %963 = vmatmul.f32.gmra.mxu0 %v861
        %v964 = vpop.f32.mrf.mxu0
        %v965 = vadd.f32 0.0, %v964
        %966 = vmatmul.f32.gmra.mxu0 %v864
        %v967 = vpop.f32.mrf.mxu0
        %v968 = vadd.f32 0.0, %v967
        %969 = vmatmul.f32.gmra.mxu0 %v867
        %v970 = vpop.f32.mrf.mxu0
        %v971 = vadd.f32 0.0, %v970
        %972 = vmatmul.f32.gmra.mxu0 %v870
        %v973 = vpop.f32.mrf.mxu0
        %v974 = vadd.f32 0.0, %v973
        %975 = vmatmul.f32.gmra.mxu0 %v873
        %v976 = vpop.f32.mrf.mxu0
        %v977 = vadd.f32 0.0, %v976
        %978 = vmatmul.f32.gmra.mxu0 %v876
        %v979 = vpop.f32.mrf.mxu0
        %v980 = vadd.f32 0.0, %v979
        %981 = vmatmul.f32.gmra.mxu0 %v879
        %v982 = vpop.f32.mrf.mxu0
        %v983 = vadd.f32 0.0, %v982
        %984 = vmatmul.f32.gmra.mxu0 %v882
        %v985 = vpop.f32.mrf.mxu0
        %v986 = vadd.f32 0.0, %v985
        %987 = vdwg.mxu0
        %988 = vmatpush.msra.mxu0 0.0
        %989 = vmatpush.msra.mxu0 0.0
        %990 = vmatpush.msra.mxu0 0.0
        %991 = vmatpush.msra.mxu0 0.0
        %992 = vmatpush.msra.mxu0 0.0
        %993 = vmatpush.msra.mxu0 0.0
        %994 = vmatpush.msra.mxu0 0.0
        %995 = vmatpush.msra.mxu0 0.0
        %996 = vmatpush.msra.mxu0 0.0
        %997 = vmatpush.msra.mxu0 0.0
        %998 = vmatpush.msra.mxu0 0.0
        %999 = vmatpush.msra.mxu0 0.0
        %1000 = vmatpush.msra.mxu0 0.0
        %1001 = vmatpush.msra.mxu0 %v892
        %1002 = vmatpush.msra.mxu0 %v847
        %1003 = vmatpush.msra.mxu0 %v840
        %1004 = vmatmul.f32.gmra.mxu0 %v861
        %v1005 = vpop.f32.mrf.mxu0
        %v1006 = vadd.f32 0.0, %v1005
        %1007 = vmatmul.f32.gmra.mxu0 %v864
        %v1008 = vpop.f32.mrf.mxu0
        %v1009 = vadd.f32 0.0, %v1008
        %1010 = vmatmul.f32.gmra.mxu0 %v867
        %v1011 = vpop.f32.mrf.mxu0
        %v1012 = vadd.f32 0.0, %v1011
        %1013 = vmatmul.f32.gmra.mxu0 %v870
        %v1014 = vpop.f32.mrf.mxu0
        %v1015 = vadd.f32 0.0, %v1014
        %1016 = vmatmul.f32.gmra.mxu0 %v873
        %v1017 = vpop.f32.mrf.mxu0
        %v1018 = vadd.f32 0.0, %v1017
        %1019 = vmatmul.f32.gmra.mxu0 %v876
        %v1020 = vpop.f32.mrf.mxu0
        %v1021 = vadd.f32 0.0, %v1020
        %1022 = vmatmul.f32.gmra.mxu0 %v879
        %v1023 = vpop.f32.mrf.mxu0
        %v1024 = vadd.f32 0.0, %v1023
        %1025 = vmatmul.f32.gmra.mxu0 %v882
        %v1026 = vpop.f32.mrf.mxu0
        %v1027 = vadd.f32 0.0, %v1026
        %1028 = vdwg.mxu0
        %1029 = vmatpush.msra.mxu0 0.0
        %1030 = vmatpush.msra.mxu0 0.0
        %1031 = vmatpush.msra.mxu0 0.0
        %1032 = vmatpush.msra.mxu0 0.0
        %1033 = vmatpush.msra.mxu0 0.0
        %1034 = vmatpush.msra.mxu0 0.0
        %1035 = vmatpush.msra.mxu0 0.0
        %1036 = vmatpush.msra.mxu0 0.0
        %1037 = vmatpush.msra.mxu0 0.0
        %1038 = vmatpush.msra.mxu0 0.0
        %1039 = vmatpush.msra.mxu0 0.0
        %1040 = vmatpush.msra.mxu0 0.0
        %1041 = vmatpush.msra.mxu0 0.0
        %1042 = vmatpush.msra.mxu0 %v895
        %1043 = vmatpush.msra.mxu0 %v848
        %1044 = vmatpush.msra.mxu0 %v841
        %1045 = vmatmul.f32.gmra.mxu0 %v861
        %v1046 = vpop.f32.mrf.mxu0
        %v1047 = vadd.f32 0.0, %v1046
        %1048 = vmatmul.f32.gmra.mxu0 %v864
        %v1049 = vpop.f32.mrf.mxu0
        %v1050 = vadd.f32 0.0, %v1049
        %1051 = vmatmul.f32.gmra.mxu0 %v867
        %v1052 = vpop.f32.mrf.mxu0
        %v1053 = vadd.f32 0.0, %v1052
        %1054 = vmatmul.f32.gmra.mxu0 %v870
        %v1055 = vpop.f32.mrf.mxu0
        %v1056 = vadd.f32 0.0, %v1055
        %1057 = vmatmul.f32.gmra.mxu0 %v873
        %v1058 = vpop.f32.mrf.mxu0
        %v1059 = vadd.f32 0.0, %v1058
        %1060 = vmatmul.f32.gmra.mxu0 %v876
        %v1061 = vpop.f32.mrf.mxu0
        %v1062 = vadd.f32 0.0, %v1061
        %1063 = vmatmul.f32.gmra.mxu0 %v879
        %v1064 = vpop.f32.mrf.mxu0
        %v1065 = vadd.f32 0.0, %v1064
        %1066 = vmatmul.f32.gmra.mxu0 %v882
        %v1067 = vpop.f32.mrf.mxu0
        %v1068 = vadd.f32 0.0, %v1067
        %1069 = vdwg.mxu0
        %1070 = vmatpush.msra.mxu0 0.0
        %1071 = vmatpush.msra.mxu0 0.0
        %1072 = vmatpush.msra.mxu0 0.0
        %1073 = vmatpush.msra.mxu0 0.0
        %1074 = vmatpush.msra.mxu0 0.0
        %1075 = vmatpush.msra.mxu0 0.0
        %1076 = vmatpush.msra.mxu0 0.0
        %1077 = vmatpush.msra.mxu0 0.0
        %1078 = vmatpush.msra.mxu0 0.0
        %1079 = vmatpush.msra.mxu0 0.0
        %1080 = vmatpush.msra.mxu0 0.0
        %1081 = vmatpush.msra.mxu0 0.0
        %1082 = vmatpush.msra.mxu0 0.0
        %1083 = vmatpush.msra.mxu0 %v898
        %1084 = vmatpush.msra.mxu0 %v849
        %1085 = vmatpush.msra.mxu0 %v842
        %1086 = vmatmul.f32.gmra.mxu0 %v861
        %v1087 = vpop.f32.mrf.mxu0
        %v1088 = vadd.f32 0.0, %v1087
        %1089 = vmatmul.f32.gmra.mxu0 %v864
        %v1090 = vpop.f32.mrf.mxu0
        %v1091 = vadd.f32 0.0, %v1090
        %1092 = vmatmul.f32.gmra.mxu0 %v867
        %v1093 = vpop.f32.mrf.mxu0
        %v1094 = vadd.f32 0.0, %v1093
        %1095 = vmatmul.f32.gmra.mxu0 %v870
        %v1096 = vpop.f32.mrf.mxu0
        %v1097 = vadd.f32 0.0, %v1096
        %1098 = vmatmul.f32.gmra.mxu0 %v873
        %v1099 = vpop.f32.mrf.mxu0
        %v1100 = vadd.f32 0.0, %v1099
        %1101 = vmatmul.f32.gmra.mxu0 %v876
        %v1102 = vpop.f32.mrf.mxu0
        %v1103 = vadd.f32 0.0, %v1102
        %1104 = vmatmul.f32.gmra.mxu0 %v879
        %v1105 = vpop.f32.mrf.mxu0
        %v1106 = vadd.f32 0.0, %v1105
        %1107 = vmatmul.f32.gmra.mxu0 %v882
        %v1108 = vpop.f32.mrf.mxu0
        %v1109 = vadd.f32 0.0, %v1108
        %1110 = vdwg.mxu0
        %1111 = vmatpush.msra.mxu0 0.0
        %1112 = vmatpush.msra.mxu0 0.0
        %1113 = vmatpush.msra.mxu0 0.0
        %1114 = vmatpush.msra.mxu0 0.0
        %1115 = vmatpush.msra.mxu0 0.0
        %1116 = vmatpush.msra.mxu0 0.0
        %1117 = vmatpush.msra.mxu0 0.0
        %1118 = vmatpush.msra.mxu0 0.0
        %1119 = vmatpush.msra.mxu0 0.0
        %1120 = vmatpush.msra.mxu0 0.0
        %1121 = vmatpush.msra.mxu0 0.0
        %1122 = vmatpush.msra.mxu0 0.0
        %1123 = vmatpush.msra.mxu0 0.0
        %1124 = vmatpush.msra.mxu0 %v901
        %1125 = vmatpush.msra.mxu0 %v850
        %1126 = vmatpush.msra.mxu0 %v843
        %1127 = vmatmul.f32.gmra.mxu0 %v861
        %v1128 = vpop.f32.mrf.mxu0
        %v1129 = vadd.f32 0.0, %v1128
        %1130 = vmatmul.f32.gmra.mxu0 %v864
        %v1131 = vpop.f32.mrf.mxu0
        %v1132 = vadd.f32 0.0, %v1131
        %1133 = vmatmul.f32.gmra.mxu0 %v867
        %v1134 = vpop.f32.mrf.mxu0
        %v1135 = vadd.f32 0.0, %v1134
        %1136 = vmatmul.f32.gmra.mxu0 %v870
        %v1137 = vpop.f32.mrf.mxu0
        %v1138 = vadd.f32 0.0, %v1137
        %1139 = vmatmul.f32.gmra.mxu0 %v873
        %v1140 = vpop.f32.mrf.mxu0
        %v1141 = vadd.f32 0.0, %v1140
        %1142 = vmatmul.f32.gmra.mxu0 %v876
        %v1143 = vpop.f32.mrf.mxu0
        %v1144 = vadd.f32 0.0, %v1143
        %1145 = vmatmul.f32.gmra.mxu0 %v879
        %v1146 = vpop.f32.mrf.mxu0
        %v1147 = vadd.f32 0.0, %v1146
        %1148 = vmatmul.f32.gmra.mxu0 %v882
        %v1149 = vpop.f32.mrf.mxu0
        %v1150 = vadd.f32 0.0, %v1149
        %1151 = vdwg.mxu0
        %1152 = vmatpush.msra.mxu0 0.0
        %1153 = vmatpush.msra.mxu0 0.0
        %1154 = vmatpush.msra.mxu0 0.0
        %1155 = vmatpush.msra.mxu0 0.0
        %1156 = vmatpush.msra.mxu0 0.0
        %1157 = vmatpush.msra.mxu0 0.0
        %1158 = vmatpush.msra.mxu0 0.0
        %1159 = vmatpush.msra.mxu0 0.0
        %1160 = vmatpush.msra.mxu0 0.0
        %1161 = vmatpush.msra.mxu0 0.0
        %1162 = vmatpush.msra.mxu0 0.0
        %1163 = vmatpush.msra.mxu0 0.0
        %1164 = vmatpush.msra.mxu0 0.0
        %1165 = vmatpush.msra.mxu0 %v904
        %1166 = vmatpush.msra.mxu0 %v851
        %1167 = vmatpush.msra.mxu0 %v844
        %1168 = vmatmul.f32.gmra.mxu0 %v861
        %v1169 = vpop.f32.mrf.mxu0
        %v1170 = vadd.f32 0.0, %v1169
        %1171 = vmatmul.f32.gmra.mxu0 %v864
        %v1172 = vpop.f32.mrf.mxu0
        %v1173 = vadd.f32 0.0, %v1172
        %1174 = vmatmul.f32.gmra.mxu0 %v867
        %v1175 = vpop.f32.mrf.mxu0
        %v1176 = vadd.f32 0.0, %v1175
        %1177 = vmatmul.f32.gmra.mxu0 %v870
        %v1178 = vpop.f32.mrf.mxu0
        %v1179 = vadd.f32 0.0, %v1178
        %1180 = vmatmul.f32.gmra.mxu0 %v873
        %v1181 = vpop.f32.mrf.mxu0
        %v1182 = vadd.f32 0.0, %v1181
        %1183 = vmatmul.f32.gmra.mxu0 %v876
        %v1184 = vpop.f32.mrf.mxu0
        %v1185 = vadd.f32 0.0, %v1184
        %1186 = vmatmul.f32.gmra.mxu0 %v879
        %v1187 = vpop.f32.mrf.mxu0
        %v1188 = vadd.f32 0.0, %v1187
        %1189 = vmatmul.f32.gmra.mxu0 %v882
        %v1190 = vpop.f32.mrf.mxu0
        %v1191 = vadd.f32 0.0, %v1190
        %1192 = vdwg.mxu0
        %v1193 = vmul.f32 %v924, %v924
        %v1194 = vmul.f32 %v965, %v965
        %v1195 = vmul.f32 %v1006, %v1006
        %v1196 = vmul.f32 %v1047, %v1047
        %v1197 = vmul.f32 %v1088, %v1088
        %v1198 = vmul.f32 %v1129, %v1129
        %v1199 = vmul.f32 %v1170, %v1170
        %v1200 = vmul.f32 %v927, %v927
        %v1201 = vmul.f32 %v968, %v968
        %v1202 = vmul.f32 %v1009, %v1009
        %v1203 = vmul.f32 %v1050, %v1050
        %v1204 = vmul.f32 %v1091, %v1091
        %v1205 = vmul.f32 %v1132, %v1132
        %v1206 = vmul.f32 %v1173, %v1173
        %v1207 = vmul.f32 %v930, %v930
        %v1208 = vmul.f32 %v971, %v971
        %v1209 = vmul.f32 %v1012, %v1012
        %v1210 = vmul.f32 %v1053, %v1053
        %v1211 = vmul.f32 %v1094, %v1094
        %v1212 = vmul.f32 %v1135, %v1135
        %v1213 = vmul.f32 %v1176, %v1176
        %v1214 = vmul.f32 %v933, %v933
        %v1215 = vmul.f32 %v974, %v974
        %v1216 = vmul.f32 %v1015, %v1015
        %v1217 = vmul.f32 %v1056, %v1056
        %v1218 = vmul.f32 %v1097, %v1097
        %v1219 = vmul.f32 %v1138, %v1138
        %v1220 = vmul.f32 %v1179, %v1179
        %v1221 = vmul.f32 %v936, %v936
        %v1222 = vmul.f32 %v977, %v977
        %v1223 = vmul.f32 %v1018, %v1018
        %v1224 = vmul.f32 %v1059, %v1059
        %v1225 = vmul.f32 %v1100, %v1100
        %v1226 = vmul.f32 %v1141, %v1141
        %v1227 = vmul.f32 %v1182, %v1182
        %v1228 = vmul.f32 %v939, %v939
        %v1229 = vmul.f32 %v980, %v980
        %v1230 = vmul.f32 %v1021, %v1021
        %v1231 = vmul.f32 %v1062, %v1062
        %v1232 = vmul.f32 %v1103, %v1103
        %v1233 = vmul.f32 %v1144, %v1144
        %v1234 = vmul.f32 %v1185, %v1185
        %v1235 = vmul.f32 %v942, %v942
        %v1236 = vmul.f32 %v983, %v983
        %v1237 = vmul.f32 %v1024, %v1024
        %v1238 = vmul.f32 %v1065, %v1065
        %v1239 = vmul.f32 %v1106, %v1106
        %v1240 = vmul.f32 %v1147, %v1147
        %v1241 = vmul.f32 %v1188, %v1188
        %v1242 = vmul.f32 %v945, %v945
        %v1243 = vmul.f32 %v986, %v986
        %v1244 = vmul.f32 %v1027, %v1027
        %v1245 = vmul.f32 %v1068, %v1068
        %v1246 = vmul.f32 %v1109, %v1109
        %v1247 = vmul.f32 %v1150, %v1150
        %v1248 = vmul.f32 %v1191, %v1191
        %v1249 = vadd.f32 %v1193, %v1221
        %v1250 = vadd.f32 %v1194, %v1222
        %v1251 = vadd.f32 %v1195, %v1223
        %v1252 = vadd.f32 %v1196, %v1224
        %v1253 = vadd.f32 %v1197, %v1225
        %v1254 = vadd.f32 %v1198, %v1226
        %v1255 = vadd.f32 %v1199, %v1227
        %v1256 = vadd.f32 %v1200, %v1228
        %v1257 = vadd.f32 %v1201, %v1229
        %v1258 = vadd.f32 %v1202, %v1230
        %v1259 = vadd.f32 %v1203, %v1231
        %v1260 = vadd.f32 %v1204, %v1232
        %v1261 = vadd.f32 %v1205, %v1233
        %v1262 = vadd.f32 %v1206, %v1234
        %v1263 = vadd.f32 %v1207, %v1235
        %v1264 = vadd.f32 %v1208, %v1236
        %v1265 = vadd.f32 %v1209, %v1237
        %v1266 = vadd.f32 %v1210, %v1238
        %v1267 = vadd.f32 %v1211, %v1239
        %v1268 = vadd.f32 %v1212, %v1240
        %v1269 = vadd.f32 %v1213, %v1241
        %v1270 = vadd.f32 %v1214, %v1242
        %v1271 = vadd.f32 %v1215, %v1243
        %v1272 = vadd.f32 %v1216, %v1244
        %v1273 = vadd.f32 %v1217, %v1245
        %v1274 = vadd.f32 %v1218, %v1246
        %v1275 = vadd.f32 %v1219, %v1247
        %v1276 = vadd.f32 %v1220, %v1248
        %v1277 = vld [vmem:[#allocation4] sm:$0xff]
        %v1278 = vld [vmem:[#allocation4 + $0x8] sm:$0xff]
        %v1279 = vld [vmem:[#allocation4 + $0x10] sm:$0xff]
        %v1280 = vld [vmem:[#allocation4 + $0x18] sm:$0xff]
        %v1281 = vld [vmem:[#allocation4 + $0x20] sm:$0xff]
        %v1282 = vld [vmem:[#allocation4 + $0x28] sm:$0xff]
        %v1283 = vld [vmem:[#allocation4 + $0x30] sm:$0xff]
        %v1284 = vld [vmem:[#allocation4 + $0x38] sm:$0xff]
        %v1285 = vld [vmem:[#allocation4 + $0x40] sm:$0xff]
        %v1286 = vld [vmem:[#allocation4 + $0x48] sm:$0xff]
        %v1287 = vld [vmem:[#allocation4 + $0x50] sm:$0xff]
        %v1288 = vld [vmem:[#allocation4 + $0x58] sm:$0xff]
        %v1289 = vld [vmem:[#allocation4 + $0x60] sm:$0xff]
        %v1290 = vld [vmem:[#allocation4 + $0x68] sm:$0xff]
        %v1291 = vld [vmem:[#allocation4 + $0x70] sm:$0xff]
        %v1292 = vld [vmem:[#allocation4 + $0x78] sm:$0xff]
        %v1293 = vld [vmem:[#allocation4 + $0x80] sm:$0xff]
        %v1294 = vld [vmem:[#allocation4 + $0x88] sm:$0xff]
        %v1295 = vld [vmem:[#allocation4 + $0x90] sm:$0xff]
        %v1296 = vld [vmem:[#allocation4 + $0x98] sm:$0xff]
        %v1297 = vld [vmem:[#allocation4 + $0xa0] sm:$0xff]
        %v1298 = vld [vmem:[#allocation4 + $0xa8] sm:$0xff]
        %v1299 = vld [vmem:[#allocation4 + $0xb0] sm:$0xff]
        %v1300 = vld [vmem:[#allocation4 + $0xb8] sm:$0xff]
        %v1301 = vld [vmem:[#allocation4 + $0xc0] sm:$0xff]
        %v1302 = vld [vmem:[#allocation4 + $0xc8] sm:$0xff]
        %v1303 = vld [vmem:[#allocation4 + $0xd0] sm:$0xff]
        %v1304 = vld [vmem:[#allocation4 + $0xd8] sm:$0xff]
        %v1305 = vld [vmem:[#allocation4 + $0xe0] sm:$0xff]
        %v1306 = vld [vmem:[#allocation4 + $0xe8] sm:$0xff]
        %v1307 = vld [vmem:[#allocation4 + $0xf0] sm:$0xff]
        %v1308 = vld [vmem:[#allocation4 + $0xf8] sm:$0xff]
        %v1309 = vld [vmem:[#allocation4 + $0x100] sm:$0xff]
        %v1310 = vld [vmem:[#allocation4 + $0x108] sm:$0xff]
        %v1311 = vld [vmem:[#allocation4 + $0x110] sm:$0xff]
        %v1312 = vld [vmem:[#allocation4 + $0x118] sm:$0xff]
        %v1313 = vld [vmem:[#allocation4 + $0x120] sm:$0xff]
        %v1314 = vld [vmem:[#allocation4 + $0x128] sm:$0xff]
        %v1315 = vld [vmem:[#allocation4 + $0x130] sm:$0xff]
        %v1316 = vld [vmem:[#allocation4 + $0x138] sm:$0xff]
        %v1317 = vld [vmem:[#allocation4 + $0x140] sm:$0xff]
        %v1318 = vld [vmem:[#allocation4 + $0x148] sm:$0xff]
        %v1319 = vld [vmem:[#allocation4 + $0x150] sm:$0xff]
        %v1320 = vld [vmem:[#allocation4 + $0x158] sm:$0xff]
        %v1321 = vld [vmem:[#allocation4 + $0x160] sm:$0xff]
        %v1322 = vld [vmem:[#allocation4 + $0x168] sm:$0xff]
        %v1323 = vld [vmem:[#allocation4 + $0x170] sm:$0xff]
        %v1324 = vld [vmem:[#allocation4 + $0x178] sm:$0xff]
        %v1325 = vld [vmem:[#allocation4 + $0x180] sm:$0xff]
        %v1326 = vld [vmem:[#allocation4 + $0x188] sm:$0xff]
        %v1327 = vld [vmem:[#allocation4 + $0x190] sm:$0xff]
        %v1328 = vld [vmem:[#allocation4 + $0x198] sm:$0xff]
        %v1329 = vld [vmem:[#allocation4 + $0x1a0] sm:$0xff]
        %v1330 = vld [vmem:[#allocation4 + $0x1a8] sm:$0xff]
        %v1331 = vld [vmem:[#allocation4 + $0x1b0] sm:$0xff]
        %v1332 = vld [vmem:[#allocation4 + $0x1b8] sm:$0xff]
        %v1333 = vld [vmem:[#allocation4 + $0x1c0] sm:$0xff]
        %v1334 = vld [vmem:[#allocation4 + $0x1c8] sm:$0xff]
        %v1335 = vld [vmem:[#allocation4 + $0x1d0] sm:$0xff]
        %v1336 = vld [vmem:[#allocation4 + $0x1d8] sm:$0xff]
        %v1337 = vld [vmem:[#allocation4 + $0x1e0] sm:$0xff]
        %v1338 = vld [vmem:[#allocation4 + $0x1e8] sm:$0xff]
        %v1339 = vld [vmem:[#allocation4 + $0x1f0] sm:$0xff]
        %v1340 = vld [vmem:[#allocation4 + $0x1f8] sm:$0xff]
        %v1341 = vld [vmem:[#allocation4 + $0x200] sm:$0xff]
        %v1342 = vld [vmem:[#allocation4 + $0x208] sm:$0xff]
        %v1343 = vld [vmem:[#allocation4 + $0x210] sm:$0xff]
        %v1344 = vld [vmem:[#allocation4 + $0x218] sm:$0xff]
        %v1345 = vld [vmem:[#allocation4 + $0x220] sm:$0xff]
        %v1346 = vld [vmem:[#allocation4 + $0x228] sm:$0xff]
        %v1347 = vld [vmem:[#allocation4 + $0x230] sm:$0xff]
        %v1348 = vld [vmem:[#allocation4 + $0x238] sm:$0xff]
        %v1349 = vld [vmem:[#allocation4 + $0x240] sm:$0xff]
        %v1350 = vld [vmem:[#allocation4 + $0x248] sm:$0xff]
        %v1351 = vld [vmem:[#allocation4 + $0x250] sm:$0xff]
        %v1352 = vld [vmem:[#allocation4 + $0x258] sm:$0xff]
        %v1353 = vld [vmem:[#allocation4 + $0x260] sm:$0xff]
        %v1354 = vld [vmem:[#allocation4 + $0x268] sm:$0xff]
        %v1355 = vld [vmem:[#allocation4 + $0x270] sm:$0xff]
        %v1356 = vld [vmem:[#allocation4 + $0x278] sm:$0xff]
        %v1357 = vld [vmem:[#allocation4 + $0x280] sm:$0xff]
        %v1358 = vld [vmem:[#allocation4 + $0x288] sm:$0xff]
        %v1359 = vld [vmem:[#allocation4 + $0x290] sm:$0xff]
        %v1360 = vld [vmem:[#allocation4 + $0x298] sm:$0xff]
        %v1361 = vld [vmem:[#allocation4 + $0x2a0] sm:$0xff]
        %v1362 = vld [vmem:[#allocation4 + $0x2a8] sm:$0xff]
        %v1363 = vld [vmem:[#allocation4 + $0x2b0] sm:$0xff]
        %v1364 = vld [vmem:[#allocation4 + $0x2b8] sm:$0xff]
        %v1365 = vld [vmem:[#allocation4 + $0x2c0] sm:$0xff]
        %v1366 = vld [vmem:[#allocation4 + $0x2c8] sm:$0xff]
        %v1367 = vld [vmem:[#allocation4 + $0x2d0] sm:$0xff]
        %v1368 = vld [vmem:[#allocation4 + $0x2d8] sm:$0xff]
        %v1369 = vld [vmem:[#allocation4 + $0x2e0] sm:$0xff]
        %v1370 = vld [vmem:[#allocation4 + $0x2e8] sm:$0xff]
        %v1371 = vld [vmem:[#allocation4 + $0x2f0] sm:$0xff]
        %v1372 = vld [vmem:[#allocation4 + $0x2f8] sm:$0xff]
        %v1373 = vld [vmem:[#allocation4 + $0x300] sm:$0xff]
        %v1374 = vld [vmem:[#allocation4 + $0x308] sm:$0xff]
        %v1375 = vld [vmem:[#allocation4 + $0x310] sm:$0xff]
        %v1376 = vld [vmem:[#allocation4 + $0x318] sm:$0xff]
        %v1378 = vsel %vm585, %v1255, 0
        %v1381 = vsel %vm585, %v1262, 0
        %v1384 = vsel %vm585, %v1269, 0
        %v1387 = vsel %vm585, %v1276, 0
        %1389 = vmatpush.msra.mxu0 %v1292
        %1390 = vmatpush.msra.mxu0 %v1291
        %1391 = vmatpush.msra.mxu0 %v1290
        %1392 = vmatpush.msra.mxu0 %v1289
        %1393 = vmatpush.msra.mxu0 %v1288
        %1394 = vmatpush.msra.mxu0 %v1287
        %1395 = vmatpush.msra.mxu0 %v1286
        %1396 = vmatpush.msra.mxu0 %v1285
        %1397 = vmatpush.msra.mxu0 %v1284
        %1398 = vmatpush.msra.mxu0 %v1283
        %1399 = vmatpush.msra.mxu0 %v1282
        %1400 = vmatpush.msra.mxu0 %v1281
        %1401 = vmatpush.msra.mxu0 %v1280
        %1402 = vmatpush.msra.mxu0 %v1279
        %1403 = vmatpush.msra.mxu0 %v1278
        %1404 = vmatpush.msra.mxu0 %v1277
        %1405 = vmatmul.f32.gmra.mxu0 %v1249
        %v1406 = vpop.f32.mrf.mxu0
        %v1407 = vadd.f32 0.0, %v1406
        %1408 = vmatmul.f32.gmra.mxu0 %v1256
        %v1409 = vpop.f32.mrf.mxu0
        %v1410 = vadd.f32 0.0, %v1409
        %1411 = vmatmul.f32.gmra.mxu0 %v1263
        %v1412 = vpop.f32.mrf.mxu0
        %v1413 = vadd.f32 0.0, %v1412
        %1414 = vmatmul.f32.gmra.mxu0 %v1270
        %v1415 = vpop.f32.mrf.mxu0
        %v1416 = vadd.f32 0.0, %v1415
        %1417 = vdwg.mxu0
        %1418 = vmatpush.msra.mxu0 %v1308
        %1419 = vmatpush.msra.mxu0 %v1307
        %1420 = vmatpush.msra.mxu0 %v1306
        %1421 = vmatpush.msra.mxu0 %v1305
        %1422 = vmatpush.msra.mxu0 %v1304
        %1423 = vmatpush.msra.mxu0 %v1303
        %1424 = vmatpush.msra.mxu0 %v1302
        %1425 = vmatpush.msra.mxu0 %v1301
        %1426 = vmatpush.msra.mxu0 %v1300
        %1427 = vmatpush.msra.mxu0 %v1299
        %1428 = vmatpush.msra.mxu0 %v1298
        %1429 = vmatpush.msra.mxu0 %v1297
        %1430 = vmatpush.msra.mxu0 %v1296
        %1431 = vmatpush.msra.mxu0 %v1295
        %1432 = vmatpush.msra.mxu0 %v1294
        %1433 = vmatpush.msra.mxu0 %v1293
        %1434 = vmatmul.f32.gmra.mxu0 %v1250
        %v1435 = vpop.f32.mrf.mxu0
        %v1436 = vadd.f32 %v1407, %v1435
        %1437 = vmatmul.f32.gmra.mxu0 %v1257
        %v1438 = vpop.f32.mrf.mxu0
        %v1439 = vadd.f32 %v1410, %v1438
        %1440 = vmatmul.f32.gmra.mxu0 %v1264
        %v1441 = vpop.f32.mrf.mxu0
        %v1442 = vadd.f32 %v1413, %v1441
        %1443 = vmatmul.f32.gmra.mxu0 %v1271
        %v1444 = vpop.f32.mrf.mxu0
        %v1445 = vadd.f32 %v1416, %v1444
        %1446 = vdwg.mxu0
        %1447 = vmatpush.msra.mxu0 %v1324
        %1448 = vmatpush.msra.mxu0 %v1323
        %1449 = vmatpush.msra.mxu0 %v1322
        %1450 = vmatpush.msra.mxu0 %v1321
        %1451 = vmatpush.msra.mxu0 %v1320
        %1452 = vmatpush.msra.mxu0 %v1319
        %1453 = vmatpush.msra.mxu0 %v1318
        %1454 = vmatpush.msra.mxu0 %v1317
        %1455 = vmatpush.msra.mxu0 %v1316
        %1456 = vmatpush.msra.mxu0 %v1315
        %1457 = vmatpush.msra.mxu0 %v1314
        %1458 = vmatpush.msra.mxu0 %v1313
        %1459 = vmatpush.msra.mxu0 %v1312
        %1460 = vmatpush.msra.mxu0 %v1311
        %1461 = vmatpush.msra.mxu0 %v1310
        %1462 = vmatpush.msra.mxu0 %v1309
        %1463 = vmatmul.f32.gmra.mxu0 %v1251
        %v1464 = vpop.f32.mrf.mxu0
        %v1465 = vadd.f32 %v1436, %v1464
        %1466 = vmatmul.f32.gmra.mxu0 %v1258
        %v1467 = vpop.f32.mrf.mxu0
        %v1468 = vadd.f32 %v1439, %v1467
        %1469 = vmatmul.f32.gmra.mxu0 %v1265
        %v1470 = vpop.f32.mrf.mxu0
        %v1471 = vadd.f32 %v1442, %v1470
        %1472 = vmatmul.f32.gmra.mxu0 %v1272
        %v1473 = vpop.f32.mrf.mxu0
        %v1474 = vadd.f32 %v1445, %v1473
        %1475 = vdwg.mxu0
        %1476 = vmatpush.msra.mxu0 %v1340
        %1477 = vmatpush.msra.mxu0 %v1339
        %1478 = vmatpush.msra.mxu0 %v1338
        %1479 = vmatpush.msra.mxu0 %v1337
        %1480 = vmatpush.msra.mxu0 %v1336
        %1481 = vmatpush.msra.mxu0 %v1335
        %1482 = vmatpush.msra.mxu0 %v1334
        %1483 = vmatpush.msra.mxu0 %v1333
        %1484 = vmatpush.msra.mxu0 %v1332
        %1485 = vmatpush.msra.mxu0 %v1331
        %1486 = vmatpush.msra.mxu0 %v1330
        %1487 = vmatpush.msra.mxu0 %v1329
        %1488 = vmatpush.msra.mxu0 %v1328
        %1489 = vmatpush.msra.mxu0 %v1327
        %1490 = vmatpush.msra.mxu0 %v1326
        %1491 = vmatpush.msra.mxu0 %v1325
        %1492 = vmatmul.f32.gmra.mxu0 %v1252
        %v1493 = vpop.f32.mrf.mxu0
        %v1494 = vadd.f32 %v1465, %v1493
        %1495 = vmatmul.f32.gmra.mxu0 %v1259
        %v1496 = vpop.f32.mrf.mxu0
        %v1497 = vadd.f32 %v1468, %v1496
        %1498 = vmatmul.f32.gmra.mxu0 %v1266
        %v1499 = vpop.f32.mrf.mxu0
        %v1500 = vadd.f32 %v1471, %v1499
        %1501 = vmatmul.f32.gmra.mxu0 %v1273
        %v1502 = vpop.f32.mrf.mxu0
        %v1503 = vadd.f32 %v1474, %v1502
        %1504 = vdwg.mxu0
        %1505 = vmatpush.msra.mxu0 %v1356
        %1506 = vmatpush.msra.mxu0 %v1355
        %1507 = vmatpush.msra.mxu0 %v1354
        %1508 = vmatpush.msra.mxu0 %v1353
        %1509 = vmatpush.msra.mxu0 %v1352
        %1510 = vmatpush.msra.mxu0 %v1351
        %1511 = vmatpush.msra.mxu0 %v1350
        %1512 = vmatpush.msra.mxu0 %v1349
        %1513 = vmatpush.msra.mxu0 %v1348
        %1514 = vmatpush.msra.mxu0 %v1347
        %1515 = vmatpush.msra.mxu0 %v1346
        %1516 = vmatpush.msra.mxu0 %v1345
        %1517 = vmatpush.msra.mxu0 %v1344
        %1518 = vmatpush.msra.mxu0 %v1343
        %1519 = vmatpush.msra.mxu0 %v1342
        %1520 = vmatpush.msra.mxu0 %v1341
        %1521 = vmatmul.f32.gmra.mxu0 %v1253
        %v1522 = vpop.f32.mrf.mxu0
        %v1523 = vadd.f32 %v1494, %v1522
        %1524 = vmatmul.f32.gmra.mxu0 %v1260
        %v1525 = vpop.f32.mrf.mxu0
        %v1526 = vadd.f32 %v1497, %v1525
        %1527 = vmatmul.f32.gmra.mxu0 %v1267
        %v1528 = vpop.f32.mrf.mxu0
        %v1529 = vadd.f32 %v1500, %v1528
        %1530 = vmatmul.f32.gmra.mxu0 %v1274
        %v1531 = vpop.f32.mrf.mxu0
        %v1532 = vadd.f32 %v1503, %v1531
        %1533 = vdwg.mxu0
        %1534 = vmatpush.msra.mxu0 %v1372
        %1535 = vmatpush.msra.mxu0 %v1371
        %1536 = vmatpush.msra.mxu0 %v1370
        %1537 = vmatpush.msra.mxu0 %v1369
        %1538 = vmatpush.msra.mxu0 %v1368
        %1539 = vmatpush.msra.mxu0 %v1367
        %1540 = vmatpush.msra.mxu0 %v1366
        %1541 = vmatpush.msra.mxu0 %v1365
        %1542 = vmatpush.msra.mxu0 %v1364
        %1543 = vmatpush.msra.mxu0 %v1363
        %1544 = vmatpush.msra.mxu0 %v1362
        %1545 = vmatpush.msra.mxu0 %v1361
        %1546 = vmatpush.msra.mxu0 %v1360
        %1547 = vmatpush.msra.mxu0 %v1359
        %1548 = vmatpush.msra.mxu0 %v1358
        %1549 = vmatpush.msra.mxu0 %v1357
        %1550 = vmatmul.f32.gmra.mxu0 %v1254
        %v1551 = vpop.f32.mrf.mxu0
        %v1552 = vadd.f32 %v1523, %v1551
        %1553 = vmatmul.f32.gmra.mxu0 %v1261
        %v1554 = vpop.f32.mrf.mxu0
        %v1555 = vadd.f32 %v1526, %v1554
        %1556 = vmatmul.f32.gmra.mxu0 %v1268
        %v1557 = vpop.f32.mrf.mxu0
        %v1558 = vadd.f32 %v1529, %v1557
        %1559 = vmatmul.f32.gmra.mxu0 %v1275
        %v1560 = vpop.f32.mrf.mxu0
        %v1561 = vadd.f32 %v1532, %v1560
        %1562 = vdwg.mxu0
        %1563 = vmatpush.msra.mxu0 0.0
        %1564 = vmatpush.msra.mxu0 0.0
        %1565 = vmatpush.msra.mxu0 0.0
        %1566 = vmatpush.msra.mxu0 0.0
        %1567 = vmatpush.msra.mxu0 0.0
        %1568 = vmatpush.msra.mxu0 0.0
        %1569 = vmatpush.msra.mxu0 0.0
        %1570 = vmatpush.msra.mxu0 0.0
        %1571 = vmatpush.msra.mxu0 0.0
        %1572 = vmatpush.msra.mxu0 0.0
        %1573 = vmatpush.msra.mxu0 0.0
        %1574 = vmatpush.msra.mxu0 0.0
        %1575 = vmatpush.msra.mxu0 %v1376
        %1576 = vmatpush.msra.mxu0 %v1375
        %1577 = vmatpush.msra.mxu0 %v1374
        %1578 = vmatpush.msra.mxu0 %v1373
        %1579 = vmatmul.f32.gmra.mxu0 %v1378
        %v1580 = vpop.f32.mrf.mxu0
        %v1581 = vadd.f32 %v1552, %v1580
        %1582 = vmatmul.f32.gmra.mxu0 %v1381
        %v1583 = vpop.f32.mrf.mxu0
        %v1584 = vadd.f32 %v1555, %v1583
        %1585 = vmatmul.f32.gmra.mxu0 %v1384
        %v1586 = vpop.f32.mrf.mxu0
        %v1587 = vadd.f32 %v1558, %v1586
        %1588 = vmatmul.f32.gmra.mxu0 %v1387
        %v1589 = vpop.f32.mrf.mxu0
        %v1590 = vadd.f32 %v1561, %v1589
        %1591 = vdwg.mxu0
        %1592 = vst [vmem:[#allocation3] sm:$0xff] 0.0
        %1593 = vst [vmem:[#allocation3 + $0x8] sm:$0xff] 0.0
        %1594 = vst [vmem:[#allocation3 + $0x10] sm:$0xff] 0.0
        %1595 = vst [vmem:[#allocation3 + $0x18] sm:$0xff] 0.0
        %vm1596 = vcmask 818176
        %1597 = vst.msk [vmem:[#allocation3] sm:$0xff] %vm1596, %v1581
        %1598 = vst.msk [vmem:[#allocation3 + $0x8] sm:$0xff] %vm1596, %v1584
        %1599 = vst.msk [vmem:[#allocation3 + $0x10] sm:$0xff] %vm1596, %v1587
        %1600 = vst.msk [vmem:[#allocation3 + $0x18] sm:$0xff] %vm1596, %v1590
        %v1601 = vld [vmem:[#allocation3] sm:$0xff]
        %v1602 = vld [vmem:[#allocation3 + $0x8] sm:$0xff]
        %v1603 = vld [vmem:[#allocation3 + $0x10] sm:$0xff]
        %v1604 = vld [vmem:[#allocation3 + $0x18] sm:$0xff]
        %v1605 = vld [vmem:[#allocation6] sm:$0xff]
        %v1606 = vld [vmem:[#allocation6 + $0x8] sm:$0xff]
        %v1607 = vld [vmem:[#allocation6 + $0x10] sm:$0xff]
        %v1608 = vld [vmem:[#allocation6 + $0x18] sm:$0xff]
        %1610 = vset.pattern.permute.xlu0 0
        %1611 = vperm.xlu0 %1610, %v1605
        %v1612 = vpop.permute.xlu0 %1611
        %1615 = vset.pattern.permute.xlu0 0
        %1616 = vperm.xlu0 %1615, %v1606
        %v1617 = vpop.permute.xlu0 %1616
        %1620 = vset.pattern.permute.xlu0 0
        %1621 = vperm.xlu0 %1620, %v1607
        %v1622 = vpop.permute.xlu0 %1621
        %1625 = vset.pattern.permute.xlu0 0
        %1626 = vperm.xlu0 %1625, %v1608
        %v1627 = vpop.permute.xlu0 %1626
        %v1629 = vmul.f32 %v1612, %v1601
        %v1630 = vmul.f32 %v1617, %v1602
        %v1631 = vmul.f32 %v1622, %v1603
        %v1632 = vmul.f32 %v1627, %v1604
        %1633 = vset.pattern.permute.xlu0 1
        %1634 = vperm.xlu0 %1633, %v1605
        %v1635 = vpop.permute.xlu0 %1634
        %1637 = vset.pattern.permute.xlu0 1
        %1638 = vperm.xlu0 %1637, %v1606
        %v1639 = vpop.permute.xlu0 %1638
        %1641 = vset.pattern.permute.xlu0 1
        %1642 = vperm.xlu0 %1641, %v1607
        %v1643 = vpop.permute.xlu0 %1642
        %1645 = vset.pattern.permute.xlu0 1
        %1646 = vperm.xlu0 %1645, %v1608
        %v1647 = vpop.permute.xlu0 %1646
        %v1649 = vmul.f32 %v1635, %v1601
        %v1650 = vmul.f32 %v1639, %v1602
        %v1651 = vmul.f32 %v1643, %v1603
        %v1652 = vmul.f32 %v1647, %v1604
        %1657 = vrot.lane.b32.xlu0 %v1649, 127
        %v1658 = vpop.permute.xlu0 %1657
        %1659 = vrot.lane.b32.xlu0 %v1650, 127
        %v1660 = vpop.permute.xlu0 %1659
        %1661 = vrot.lane.b32.xlu0 %v1651, 127
        %v1662 = vpop.permute.xlu0 %1661
        %1663 = vrot.lane.b32.xlu0 %v1652, 127
        %v1664 = vpop.permute.xlu0 %1663
        %v1669 = vadd.f32 %v1629, %v1658
        %v1670 = vadd.f32 %v1630, %v1660
        %v1671 = vadd.f32 %v1631, %v1662
        %v1672 = vadd.f32 %v1632, %v1664
        %v1673 = vld [vmem:[#allocation8] sm:$0xff]
        %v1674 = vld [vmem:[#allocation8 + $0x8] sm:$0xff]
        %v1675 = vld [vmem:[#allocation8 + $0x10] sm:$0xff]
        %v1676 = vld [vmem:[#allocation8 + $0x18] sm:$0xff]
        %v1677 = vmax.f32 %v1669, 0.0
        %v1678 = vmax.f32 %v1670, 0.0
        %v1679 = vmax.f32 %v1671, 0.0
        %v1680 = vmax.f32 %v1672, 0.0
        %v1681 = vld [vmem:[#allocation9] sm:$0xff]
        %v1682 = vld [vmem:[#allocation9 + $0x8] sm:$0xff]
        %v1683 = vld [vmem:[#allocation9 + $0x10] sm:$0xff]
        %v1684 = vld [vmem:[#allocation9 + $0x18] sm:$0xff]
        %1689 = vrot.lane.b32.xlu0 %v1581, 127
        %v1690 = vpop.permute.xlu0 %1689
        %1691 = vrot.lane.b32.xlu0 %v1584, 127
        %v1692 = vpop.permute.xlu0 %1691
        %1693 = vrot.lane.b32.xlu0 %v1587, 127
        %v1694 = vpop.permute.xlu0 %1693
        %1695 = vrot.lane.b32.xlu0 %v1590, 127
        %v1696 = vpop.permute.xlu0 %1695
        %v1702 = vsel %vm585, %v1681, 0
        %v1705 = vsel %vm585, %v1682, 0
        %v1708 = vsel %vm585, %v1683, 0
        %v1711 = vsel %vm585, %v1684, 0
        %1713 = vmatpush.msra.mxu0 0.0
        %1714 = vmatpush.msra.mxu0 0.0
        %1715 = vmatpush.msra.mxu0 0.0
        %1716 = vmatpush.msra.mxu0 0.0
        %1717 = vmatpush.msra.mxu0 0.0
        %1718 = vmatpush.msra.mxu0 0.0
        %1719 = vmatpush.msra.mxu0 0.0
        %1720 = vmatpush.msra.mxu0 0.0
        %1721 = vmatpush.msra.mxu0 0.0
        %1722 = vmatpush.msra.mxu0 0.0
        %1723 = vmatpush.msra.mxu0 0.0
        %1724 = vmatpush.msra.mxu0 0.0
        %1725 = vmatpush.msra.mxu0 %v1680
        %1726 = vmatpush.msra.mxu0 %v1679
        %1727 = vmatpush.msra.mxu0 %v1678
        %1728 = vmatpush.msra.mxu0 %v1677
        %1729 = vmatmul.f32.gmra.mxu0 %v1702
        %v1730 = vpop.f32.mrf.mxu0
        %v1731 = vadd.f32 %v1690, %v1730
        %1732 = vmatmul.f32.gmra.mxu0 %v1705
        %v1733 = vpop.f32.mrf.mxu0
        %v1734 = vadd.f32 %v1692, %v1733
        %1735 = vmatmul.f32.gmra.mxu0 %v1708
        %v1736 = vpop.f32.mrf.mxu0
        %v1737 = vadd.f32 %v1694, %v1736
        %1738 = vmatmul.f32.gmra.mxu0 %v1711
        %v1739 = vpop.f32.mrf.mxu0
        %v1740 = vadd.f32 %v1696, %v1739
        %1741 = vdwg.mxu0
        %1742 = vst [vmem:[#allocation3] sm:$0xff] 0.0
        %1743 = vst [vmem:[#allocation3 + $0x8] sm:$0xff] 0.0
        %1744 = vst [vmem:[#allocation3 + $0x10] sm:$0xff] 0.0
        %1745 = vst [vmem:[#allocation3 + $0x18] sm:$0xff] 0.0
        %1750 = vrot.lane.b32.xlu0 %v1731, 1
        %v1751 = vpop.permute.xlu0 %1750
        %1752 = vrot.lane.b32.xlu0 %v1734, 1
        %v1753 = vpop.permute.xlu0 %1752
        %1754 = vrot.lane.b32.xlu0 %v1737, 1
        %v1755 = vpop.permute.xlu0 %1754
        %1756 = vrot.lane.b32.xlu0 %v1740, 1
        %v1757 = vpop.permute.xlu0 %1756
        %vm1762 = vcmask 818184
        %1763 = vst.msk [vmem:[#allocation3] sm:$0xff] %vm1762, %v1751
        %1764 = vst.msk [vmem:[#allocation3 + $0x8] sm:$0xff] %vm1762, %v1753
        %1765 = vst.msk [vmem:[#allocation3 + $0x10] sm:$0xff] %vm1762, %v1755
        %1766 = vst.msk [vmem:[#allocation3 + $0x18] sm:$0xff] %vm1762, %v1757
        %v1767 = vld [vmem:[#allocation3] sm:$0xff]
        %v1768 = vld [vmem:[#allocation3 + $0x8] sm:$0xff]
        %v1769 = vld [vmem:[#allocation3 + $0x10] sm:$0xff]
        %v1770 = vld [vmem:[#allocation3 + $0x18] sm:$0xff]
        %s1771 = scalar_lea.vmem [#allocation6], 32
        %v1772 = vld [vmem:[%s1771] sm:$0xff]
        %v1773 = vld [vmem:[%s1771 + $0x8] sm:$0xff]
        %v1774 = vld [vmem:[%s1771 + $0x10] sm:$0xff]
        %v1775 = vld [vmem:[%s1771 + $0x18] sm:$0xff]
        %1777 = vset.pattern.permute.xlu0 0
        %1778 = vperm.xlu0 %1777, %v1772
        %v1779 = vpop.permute.xlu0 %1778
        %1782 = vset.pattern.permute.xlu0 0
        %1783 = vperm.xlu0 %1782, %v1773
        %v1784 = vpop.permute.xlu0 %1783
        %1787 = vset.pattern.permute.xlu0 0
        %1788 = vperm.xlu0 %1787, %v1774
        %v1789 = vpop.permute.xlu0 %1788
        %1792 = vset.pattern.permute.xlu0 0
        %1793 = vperm.xlu0 %1792, %v1775
        %v1794 = vpop.permute.xlu0 %1793
        %v1796 = vmul.f32 %v1779, %v1767
        %v1797 = vmul.f32 %v1784, %v1768
        %v1798 = vmul.f32 %v1789, %v1769
        %v1799 = vmul.f32 %v1794, %v1770
        %1800 = vset.pattern.permute.xlu0 1
        %1801 = vperm.xlu0 %1800, %v1772
        %v1802 = vpop.permute.xlu0 %1801
        %1804 = vset.pattern.permute.xlu0 1
        %1805 = vperm.xlu0 %1804, %v1773
        %v1806 = vpop.permute.xlu0 %1805
        %1808 = vset.pattern.permute.xlu0 1
        %1809 = vperm.xlu0 %1808, %v1774
        %v1810 = vpop.permute.xlu0 %1809
        %1812 = vset.pattern.permute.xlu0 1
        %1813 = vperm.xlu0 %1812, %v1775
        %v1814 = vpop.permute.xlu0 %1813
        %v1816 = vmul.f32 %v1802, %v1767
        %v1817 = vmul.f32 %v1806, %v1768
        %v1818 = vmul.f32 %v1810, %v1769
        %v1819 = vmul.f32 %v1814, %v1770
        %1824 = vrot.lane.b32.xlu0 %v1816, 126
        %v1825 = vpop.permute.xlu0 %1824
        %1826 = vrot.lane.b32.xlu0 %v1817, 126
        %v1827 = vpop.permute.xlu0 %1826
        %1828 = vrot.lane.b32.xlu0 %v1818, 126
        %v1829 = vpop.permute.xlu0 %1828
        %1830 = vrot.lane.b32.xlu0 %v1819, 126
        %v1831 = vpop.permute.xlu0 %1830
        %v1836 = vadd.f32 %v1796, %v1825
        %v1837 = vadd.f32 %v1797, %v1827
        %v1838 = vadd.f32 %v1798, %v1829
        %v1839 = vadd.f32 %v1799, %v1831
        %s1840 = scalar_lea.vmem [#allocation8], 32
        %v1841 = vld [vmem:[%s1840] sm:$0xff]
        %v1842 = vld [vmem:[%s1840 + $0x8] sm:$0xff]
        %v1843 = vld [vmem:[%s1840 + $0x10] sm:$0xff]
        %v1844 = vld [vmem:[%s1840 + $0x18] sm:$0xff]
        %v1846 = vsel %vm585, %v1841, 0
        %v1849 = vsel %vm585, %v1842, 0
        %v1852 = vsel %vm585, %v1843, 0
        %v1855 = vsel %vm585, %v1844, 0
        %1857 = vmatpush.msra.mxu0 0.0
        %1858 = vmatpush.msra.mxu0 0.0
        %1859 = vmatpush.msra.mxu0 0.0
        %1860 = vmatpush.msra.mxu0 0.0
        %1861 = vmatpush.msra.mxu0 0.0
        %1862 = vmatpush.msra.mxu0 0.0
        %1863 = vmatpush.msra.mxu0 0.0
        %1864 = vmatpush.msra.mxu0 0.0
        %1865 = vmatpush.msra.mxu0 0.0
        %1866 = vmatpush.msra.mxu0 0.0
        %1867 = vmatpush.msra.mxu0 0.0
        %1868 = vmatpush.msra.mxu0 0.0
        %1869 = vmatpush.msra.mxu0 %v1839
        %1870 = vmatpush.msra.mxu0 %v1838
        %1871 = vmatpush.msra.mxu0 %v1837
        %1872 = vmatpush.msra.mxu0 %v1836
        %1873 = vmatmul.f32.gmra.mxu0 %v1846
        %v1874 = vpop.f32.mrf.mxu0
        %v1875 = vadd.f32 0.0, %v1874
        %1876 = vmatmul.f32.gmra.mxu0 %v1849
        %v1877 = vpop.f32.mrf.mxu0
        %v1878 = vadd.f32 0.0, %v1877
        %1879 = vmatmul.f32.gmra.mxu0 %v1852
        %v1880 = vpop.f32.mrf.mxu0
        %v1881 = vadd.f32 0.0, %v1880
        %1882 = vmatmul.f32.gmra.mxu0 %v1855
        %v1883 = vpop.f32.mrf.mxu0
        %v1884 = vadd.f32 0.0, %v1883
        %1885 = vdwg.mxu0
        %v1886 = vmax.f32 %v1836, 0.0
        %v1887 = vmax.f32 %v1837, 0.0
        %v1888 = vmax.f32 %v1838, 0.0
        %v1889 = vmax.f32 %v1839, 0.0
        %s1890 = scalar_lea.vmem [#allocation9], 32
        %v1891 = vld [vmem:[%s1890] sm:$0xff]
        %v1892 = vld [vmem:[%s1890 + $0x8] sm:$0xff]
        %v1893 = vld [vmem:[%s1890 + $0x10] sm:$0xff]
        %v1894 = vld [vmem:[%s1890 + $0x18] sm:$0xff]
        %v1896 = vsel %vm585, %v1891, 0
        %v1899 = vsel %vm585, %v1892, 0
        %v1902 = vsel %vm585, %v1893, 0
        %v1905 = vsel %vm585, %v1894, 0
        %1907 = vmatpush.msra.mxu0 0.0
        %1908 = vmatpush.msra.mxu0 0.0
        %1909 = vmatpush.msra.mxu0 0.0
        %1910 = vmatpush.msra.mxu0 0.0
        %1911 = vmatpush.msra.mxu0 0.0
        %1912 = vmatpush.msra.mxu0 0.0
        %1913 = vmatpush.msra.mxu0 0.0
        %1914 = vmatpush.msra.mxu0 0.0
        %1915 = vmatpush.msra.mxu0 0.0
        %1916 = vmatpush.msra.mxu0 0.0
        %1917 = vmatpush.msra.mxu0 0.0
        %1918 = vmatpush.msra.mxu0 0.0
        %1919 = vmatpush.msra.mxu0 %v1889
        %1920 = vmatpush.msra.mxu0 %v1888
        %1921 = vmatpush.msra.mxu0 %v1887
        %1922 = vmatpush.msra.mxu0 %v1886
        %1923 = vmatmul.f32.gmra.mxu0 %v1896
        %v1924 = vpop.f32.mrf.mxu0
        %v1925 = vadd.f32 %v1731, %v1924
        %1926 = vmatmul.f32.gmra.mxu0 %v1899
        %v1927 = vpop.f32.mrf.mxu0
        %v1928 = vadd.f32 %v1734, %v1927
        %1929 = vmatmul.f32.gmra.mxu0 %v1902
        %v1930 = vpop.f32.mrf.mxu0
        %v1931 = vadd.f32 %v1737, %v1930
        %1932 = vmatmul.f32.gmra.mxu0 %v1905
        %v1933 = vpop.f32.mrf.mxu0
        %v1934 = vadd.f32 %v1740, %v1933
        %1935 = vdwg.mxu0
        %1936 = vst [vmem:[#allocation3] sm:$0xff] 0.0
        %1937 = vst [vmem:[#allocation3 + $0x8] sm:$0xff] 0.0
        %1938 = vst [vmem:[#allocation3 + $0x10] sm:$0xff] 0.0
        %1939 = vst [vmem:[#allocation3 + $0x18] sm:$0xff] 0.0
        %1944 = vrot.lane.b32.xlu0 %v1925, 2
        %v1945 = vpop.permute.xlu0 %1944
        %1946 = vrot.lane.b32.xlu0 %v1928, 2
        %v1947 = vpop.permute.xlu0 %1946
        %1948 = vrot.lane.b32.xlu0 %v1931, 2
        %v1949 = vpop.permute.xlu0 %1948
        %1950 = vrot.lane.b32.xlu0 %v1934, 2
        %v1951 = vpop.permute.xlu0 %1950
        %vm1956 = vcmask 826384
        %1957 = vst.msk [vmem:[#allocation3] sm:$0xff] %vm1956, %v1945
        %1958 = vst.msk [vmem:[#allocation3 + $0x8] sm:$0xff] %vm1956, %v1947
        %1959 = vst.msk [vmem:[#allocation3 + $0x10] sm:$0xff] %vm1956, %v1949
        %1960 = vst.msk [vmem:[#allocation3 + $0x18] sm:$0xff] %vm1956, %v1951
        %v1961 = vld [vmem:[#allocation3] sm:$0xff]
        %v1962 = vld [vmem:[#allocation3 + $0x8] sm:$0xff]
        %v1963 = vld [vmem:[#allocation3 + $0x10] sm:$0xff]
        %v1964 = vld [vmem:[#allocation3 + $0x18] sm:$0xff]
        %s1965 = scalar_lea.vmem [#allocation6], 64
        %v1966 = vld [vmem:[%s1965] sm:$0xff]
        %v1967 = vld [vmem:[%s1965 + $0x8] sm:$0xff]
        %v1968 = vld [vmem:[%s1965 + $0x10] sm:$0xff]
        %v1969 = vld [vmem:[%s1965 + $0x18] sm:$0xff]
        %1971 = vset.pattern.permute.xlu0 0
        %1972 = vperm.xlu0 %1971, %v1966
        %v1973 = vpop.permute.xlu0 %1972
        %1976 = vset.pattern.permute.xlu0 0
        %1977 = vperm.xlu0 %1976, %v1967
        %v1978 = vpop.permute.xlu0 %1977
        %1981 = vset.pattern.permute.xlu0 0
        %1982 = vperm.xlu0 %1981, %v1968
        %v1983 = vpop.permute.xlu0 %1982
        %1986 = vset.pattern.permute.xlu0 0
        %1987 = vperm.xlu0 %1986, %v1969
        %v1988 = vpop.permute.xlu0 %1987
        %v1990 = vmul.f32 %v1973, %v1961
        %v1991 = vmul.f32 %v1978, %v1962
        %v1992 = vmul.f32 %v1983, %v1963
        %v1993 = vmul.f32 %v1988, %v1964
        %1994 = vset.pattern.permute.xlu0 1
        %1995 = vperm.xlu0 %1994, %v1966
        %v1996 = vpop.permute.xlu0 %1995
        %1998 = vset.pattern.permute.xlu0 1
        %1999 = vperm.xlu0 %1998, %v1967
        %v2000 = vpop.permute.xlu0 %1999
        %2002 = vset.pattern.permute.xlu0 1
        %2003 = vperm.xlu0 %2002, %v1968
        %v2004 = vpop.permute.xlu0 %2003
        %2006 = vset.pattern.permute.xlu0 1
        %2007 = vperm.xlu0 %2006, %v1969
        %v2008 = vpop.permute.xlu0 %2007
        %v2010 = vmul.f32 %v1996, %v1961
        %v2011 = vmul.f32 %v2000, %v1962
        %v2012 = vmul.f32 %v2004, %v1963
        %v2013 = vmul.f32 %v2008, %v1964
        %2018 = vrot.lane.b32.xlu0 %v2010, 124
        %v2019 = vpop.permute.xlu0 %2018
        %2020 = vrot.lane.b32.xlu0 %v2011, 124
        %v2021 = vpop.permute.xlu0 %2020
        %2022 = vrot.lane.b32.xlu0 %v2012, 124
        %v2023 = vpop.permute.xlu0 %2022
        %2024 = vrot.lane.b32.xlu0 %v2013, 124
        %v2025 = vpop.permute.xlu0 %2024
        %v2030 = vadd.f32 %v1990, %v2019
        %v2031 = vadd.f32 %v1991, %v2021
        %v2032 = vadd.f32 %v1992, %v2023
        %v2033 = vadd.f32 %v1993, %v2025
        %s2034 = scalar_lea.vmem [#allocation8], 64
        %v2035 = vld [vmem:[%s2034] sm:$0xff]
        %v2036 = vld [vmem:[%s2034 + $0x8] sm:$0xff]
        %v2037 = vld [vmem:[%s2034 + $0x10] sm:$0xff]
        %v2038 = vld [vmem:[%s2034 + $0x18] sm:$0xff]
        %v2040 = vsel %vm585, %v2035, 0
        %v2043 = vsel %vm585, %v2036, 0
        %v2046 = vsel %vm585, %v2037, 0
        %v2049 = vsel %vm585, %v2038, 0
        %2051 = vmatpush.msra.mxu0 0.0
        %2052 = vmatpush.msra.mxu0 0.0
        %2053 = vmatpush.msra.mxu0 0.0
        %2054 = vmatpush.msra.mxu0 0.0
        %2055 = vmatpush.msra.mxu0 0.0
        %2056 = vmatpush.msra.mxu0 0.0
        %2057 = vmatpush.msra.mxu0 0.0
        %2058 = vmatpush.msra.mxu0 0.0
        %2059 = vmatpush.msra.mxu0 0.0
        %2060 = vmatpush.msra.mxu0 0.0
        %2061 = vmatpush.msra.mxu0 0.0
        %2062 = vmatpush.msra.mxu0 0.0
        %2063 = vmatpush.msra.mxu0 %v2033
        %2064 = vmatpush.msra.mxu0 %v2032
        %2065 = vmatpush.msra.mxu0 %v2031
        %2066 = vmatpush.msra.mxu0 %v2030
        %2067 = vmatmul.f32.gmra.mxu0 %v2040
        %v2068 = vpop.f32.mrf.mxu0
        %v2069 = vadd.f32 0.0, %v2068
        %2070 = vmatmul.f32.gmra.mxu0 %v2043
        %v2071 = vpop.f32.mrf.mxu0
        %v2072 = vadd.f32 0.0, %v2071
        %2073 = vmatmul.f32.gmra.mxu0 %v2046
        %v2074 = vpop.f32.mrf.mxu0
        %v2075 = vadd.f32 0.0, %v2074
        %2076 = vmatmul.f32.gmra.mxu0 %v2049
        %v2077 = vpop.f32.mrf.mxu0
        %v2078 = vadd.f32 0.0, %v2077
        %2079 = vdwg.mxu0
        %v2081 = vsel %vm585, %v1673, 0
        %v2084 = vsel %vm585, %v1674, 0
        %v2087 = vsel %vm585, %v1675, 0
        %v2090 = vsel %vm585, %v1676, 0
        %2092 = vmatpush.msra.mxu0 0.0
        %2093 = vmatpush.msra.mxu0 0.0
        %2094 = vmatpush.msra.mxu0 0.0
        %2095 = vmatpush.msra.mxu0 0.0
        %2096 = vmatpush.msra.mxu0 0.0
        %2097 = vmatpush.msra.mxu0 0.0
        %2098 = vmatpush.msra.mxu0 0.0
        %2099 = vmatpush.msra.mxu0 0.0
        %2100 = vmatpush.msra.mxu0 0.0
        %2101 = vmatpush.msra.mxu0 0.0
        %2102 = vmatpush.msra.mxu0 0.0
        %2103 = vmatpush.msra.mxu0 0.0
        %2104 = vmatpush.msra.mxu0 %v1672
        %2105 = vmatpush.msra.mxu0 %v1671
        %2106 = vmatpush.msra.mxu0 %v1670
        %2107 = vmatpush.msra.mxu0 %v1669
        %2108 = vmatmul.f32.gmra.mxu0 %v2081
        %v2109 = vpop.f32.mrf.mxu0
        %v2110 = vadd.f32 %v1875, %v2109
        %2111 = vmatmul.f32.gmra.mxu0 %v2084
        %v2112 = vpop.f32.mrf.mxu0
        %v2113 = vadd.f32 %v1878, %v2112
        %2114 = vmatmul.f32.gmra.mxu0 %v2087
        %v2115 = vpop.f32.mrf.mxu0
        %v2116 = vadd.f32 %v1881, %v2115
        %2117 = vmatmul.f32.gmra.mxu0 %v2090
        %v2118 = vpop.f32.mrf.mxu0
        %v2119 = vadd.f32 %v1884, %v2118
        %2120 = vdwg.mxu0
        %v2121 = vadd.f32 %v2110, %v2069
        %v2122 = vadd.f32 %v2113, %v2072
        %v2123 = vadd.f32 %v2116, %v2075
        %v2124 = vadd.f32 %v2119, %v2078
        %vm2125 = vcmask 809984
        %v2126 = vsel %vm2125, %v2121, 0.0
        %2127 = vadd.xlane.f32.xlu0 %v2126
        %v2128 = vpop.xlane.xlu0 %2127
        %v2129 = vsel %vm2125, %v2122, 0.0
        %2130 = vadd.xlane.f32.xlu0 %v2129
        %v2131 = vpop.xlane.xlu0 %2130
        %v2132 = vsel %vm2125, %v2123, 0.0
        %2133 = vadd.xlane.f32.xlu0 %v2132
        %v2134 = vpop.xlane.xlu0 %2133
        %v2135 = vsel %vm2125, %v2124, 0.0
        %2136 = vadd.xlane.f32.xlu0 %v2135
        %v2137 = vpop.xlane.xlu0 %2136
        %v2138 = vrcp.pop 99.0
        %v2139 = vmul.f32 99.0, %v2138
        %v2140 = vsub.f32 1.0, %v2139
        %v2141 = vmul.f32 %v2138, %v2140
        %v2142 = vadd.f32 %v2138, %v2141
        %vm2143 = vweird.f32 %v2138
        %v2144 = vsel %vm2143, %v2138, %v2142
        %v2145 = vmul.f32 %v2128, %v2144
        %v2146 = vmul.f32 %v2131, %v2144
        %v2147 = vmul.f32 %v2134, %v2144
        %v2148 = vmul.f32 %v2137, %v2144
        %v2149 = vld [vmem:[%s6] sm:$0xff]
        %v2150 = vld [vmem:[%s7] sm:$0xff]
        %v2152 = vsel %vm585, %v2149, 0
        %2154 = vmatpush.msra.mxu0 0.0
        %2155 = vmatpush.msra.mxu0 0.0
        %2156 = vmatpush.msra.mxu0 0.0
        %2157 = vmatpush.msra.mxu0 0.0
        %2158 = vmatpush.msra.mxu0 0.0
        %2159 = vmatpush.msra.mxu0 0.0
        %2160 = vmatpush.msra.mxu0 0.0
        %2161 = vmatpush.msra.mxu0 0.0
        %2162 = vmatpush.msra.mxu0 0.0
        %2163 = vmatpush.msra.mxu0 0.0
        %2164 = vmatpush.msra.mxu0 0.0
        %2165 = vmatpush.msra.mxu0 0.0
        %2166 = vmatpush.msra.mxu0 %v2148
        %2167 = vmatpush.msra.mxu0 %v2147
        %2168 = vmatpush.msra.mxu0 %v2146
        %2169 = vmatpush.msra.mxu0 %v2145
        %2170 = vmatmul.f32.gmra.mxu0 %v2152
        %v2171 = vpop.f32.mrf.mxu0
        %v2172 = vadd.f32 %v2150, %v2171
        %2173 = vdwg.mxu0
        %v2174 = vmax.f32 %v2172, 0.0
        %v2175 = vld [vmem:[#allocation11] sm:$0xff]
        %v2176 = vld [vmem:[#allocation11 + $0x8] sm:$0xff]
        %v2177 = vld [vmem:[#allocation11 + $0x10] sm:$0xff]
        %v2178 = vld [vmem:[#allocation11 + $0x18] sm:$0xff]
        %v2179 = vld [vmem:[%s9] sm:$0xff]
        %v2180 = vld [vmem:[%s9 + $0x8] sm:$0xff]
        %v2181 = vld [vmem:[%s9 + $0x10] sm:$0xff]
        %v2182 = vld [vmem:[%s9 + $0x18] sm:$0xff]
        %v2184 = vsel %vm630, %v2175, 0
        %v2187 = vsel %vm630, %v2176, 0
        %v2190 = vsel %vm630, %v2177, 0
        %v2193 = vsel %vm630, %v2178, 0
        %2195 = vmatpush.msra.mxu0 0.0
        %2196 = vmatpush.msra.mxu0 0.0
        %2197 = vmatpush.msra.mxu0 0.0
        %2198 = vmatpush.msra.mxu0 0.0
        %2199 = vmatpush.msra.mxu0 0.0
        %2200 = vmatpush.msra.mxu0 0.0
        %2201 = vmatpush.msra.mxu0 0.0
        %2202 = vmatpush.msra.mxu0 0.0
        %2203 = vmatpush.msra.mxu0 0.0
        %2204 = vmatpush.msra.mxu0 0.0
        %2205 = vmatpush.msra.mxu0 0.0
        %2206 = vmatpush.msra.mxu0 0.0
        %2207 = vmatpush.msra.mxu0 0.0
        %2208 = vmatpush.msra.mxu0 0.0
        %2209 = vmatpush.msra.mxu0 0.0
        %2210 = vmatpush.msra.mxu0 %v2174
        %2211 = vmatmul.f32.gmra.mxu0 %v2184
        %v2212 = vpop.f32.mrf.mxu0
        %v2213 = vadd.f32 %v2179, %v2212
        %2214 = vmatmul.f32.gmra.mxu0 %v2187
        %v2215 = vpop.f32.mrf.mxu0
        %v2216 = vadd.f32 %v2180, %v2215
        %2217 = vmatmul.f32.gmra.mxu0 %v2190
        %v2218 = vpop.f32.mrf.mxu0
        %v2219 = vadd.f32 %v2181, %v2218
        %2220 = vmatmul.f32.gmra.mxu0 %v2193
        %v2221 = vpop.f32.mrf.mxu0
        %v2222 = vadd.f32 %v2182, %v2221
        %2223 = vdwg.mxu0
        %v2224 = vxor.u32 %v2213, 2147483648
        %v2225 = vxor.u32 %v2216, 2147483648
        %v2226 = vxor.u32 %v2219, 2147483648
        %v2227 = vxor.u32 %v2222, 2147483648
        %v2228 = vmul.f32 %v2224, 1.442695
        %v2229 = vpow.pop %v2228
        %v2230 = vmul.f32 %v2225, 1.442695
        %v2231 = vpow.pop %v2230
        %v2232 = vmul.f32 %v2226, 1.442695
        %v2233 = vpow.pop %v2232
        %v2234 = vmul.f32 %v2227, 1.442695
        %v2235 = vpow.pop %v2234
        %v2236 = vadd.f32 %v2229, 1.0
        %v2237 = vadd.f32 %v2231, 1.0
        %v2238 = vadd.f32 %v2233, 1.0
        %v2239 = vadd.f32 %v2235, 1.0
        %v2240 = vrcp.pop %v2236
        %v2241 = vmul.f32 %v2236, %v2240
        %v2242 = vsub.f32 1.0, %v2241
        %v2243 = vmul.f32 %v2240, %v2242
        %v2244 = vadd.f32 %v2240, %v2243
        %vm2245 = vweird.f32 %v2236
        %vm2246 = vweird.f32 %v2240
        %vm2247 = vmor %vm2245, %vm2246
        %v2248 = vsel %vm2247, %v2240, %v2244
        %v2249 = vand.u32 2147483647, %v2236
        %vm2250 = vcmp.eq.f32.partialorder %v2249, 8.507059e+37
        %v2251 = vand.u32 %v2236, 2147483648
        %v2252 = vor.u32 1.1754944e-38, %v2251
        %v2253 = vsel %vm2250, %v2252, %v2248
        %v2254 = vmul.f32 1.0, %v2253
        %v2255 = vrcp.pop %v2237
        %v2256 = vmul.f32 %v2237, %v2255
        %v2257 = vsub.f32 1.0, %v2256
        %v2258 = vmul.f32 %v2255, %v2257
        %v2259 = vadd.f32 %v2255, %v2258
        %vm2260 = vweird.f32 %v2237
        %vm2261 = vweird.f32 %v2255
        %vm2262 = vmor %vm2260, %vm2261
        %v2263 = vsel %vm2262, %v2255, %v2259
        %v2264 = vand.u32 2147483647, %v2237
        %vm2265 = vcmp.eq.f32.partialorder %v2264, 8.507059e+37
        %v2266 = vand.u32 %v2237, 2147483648
        %v2267 = vor.u32 1.1754944e-38, %v2266
        %v2268 = vsel %vm2265, %v2267, %v2263
        %v2269 = vmul.f32 1.0, %v2268
        %v2270 = vrcp.pop %v2238
        %v2271 = vmul.f32 %v2238, %v2270
        %v2272 = vsub.f32 1.0, %v2271
        %v2273 = vmul.f32 %v2270, %v2272
        %v2274 = vadd.f32 %v2270, %v2273
        %vm2275 = vweird.f32 %v2238
        %vm2276 = vweird.f32 %v2270
        %vm2277 = vmor %vm2275, %vm2276
        %v2278 = vsel %vm2277, %v2270, %v2274
        %v2279 = vand.u32 2147483647, %v2238
        %vm2280 = vcmp.eq.f32.partialorder %v2279, 8.507059e+37
        %v2281 = vand.u32 %v2238, 2147483648
        %v2282 = vor.u32 1.1754944e-38, %v2281
        %v2283 = vsel %vm2280, %v2282, %v2278
        %v2284 = vmul.f32 1.0, %v2283
        %v2285 = vrcp.pop %v2239
        %v2286 = vmul.f32 %v2239, %v2285
        %v2287 = vsub.f32 1.0, %v2286
        %v2288 = vmul.f32 %v2285, %v2287
        %v2289 = vadd.f32 %v2285, %v2288
        %vm2290 = vweird.f32 %v2239
        %vm2291 = vweird.f32 %v2285
        %vm2292 = vmor %vm2290, %vm2291
        %v2293 = vsel %vm2292, %v2285, %v2289
        %v2294 = vand.u32 2147483647, %v2239
        %vm2295 = vcmp.eq.f32.partialorder %v2294, 8.507059e+37
        %v2296 = vand.u32 %v2239, 2147483648
        %v2297 = vor.u32 1.1754944e-38, %v2296
        %v2298 = vsel %vm2295, %v2297, %v2293
        %v2299 = vmul.f32 1.0, %v2298
        %2301 = vset.pattern.permute.xlu0 0
        %2302 = vperm.xlu0 %2301, %v2254
        %v2303 = vpop.permute.xlu0 %2302
        %2306 = vset.pattern.permute.xlu0 0
        %2307 = vperm.xlu0 %2306, %v2269
        %v2308 = vpop.permute.xlu0 %2307
        %2311 = vset.pattern.permute.xlu0 0
        %2312 = vperm.xlu0 %2311, %v2284
        %v2313 = vpop.permute.xlu0 %2312
        %2316 = vset.pattern.permute.xlu0 0
        %2317 = vperm.xlu0 %2316, %v2299
        %v2318 = vpop.permute.xlu0 %2317
        %v2320 = vmul.f32 %v2121, %v2303
        %v2321 = vmul.f32 %v2122, %v2308
        %v2322 = vmul.f32 %v2123, %v2313
        %v2323 = vmul.f32 %v2124, %v2318
        %v2324 = vld [vmem:[#allocation12] sm:$0xff]
        %v2325 = vld [vmem:[#allocation12 + $0x8] sm:$0xff]
        %v2326 = vld [vmem:[#allocation12 + $0x10] sm:$0xff]
        %v2327 = vld [vmem:[#allocation12 + $0x18] sm:$0xff]
        %v2329 = vsel %vm585, %v2324, 0
        %v2332 = vsel %vm585, %v2325, 0
        %v2335 = vsel %vm585, %v2326, 0
        %v2338 = vsel %vm585, %v2327, 0
        %2340 = vmatpush.msra.mxu0 0.0
        %2341 = vmatpush.msra.mxu0 0.0
        %2342 = vmatpush.msra.mxu0 0.0
        %2343 = vmatpush.msra.mxu0 0.0
        %2344 = vmatpush.msra.mxu0 0.0
        %2345 = vmatpush.msra.mxu0 0.0
        %2346 = vmatpush.msra.mxu0 0.0
        %2347 = vmatpush.msra.mxu0 0.0
        %2348 = vmatpush.msra.mxu0 0.0
        %2349 = vmatpush.msra.mxu0 0.0
        %2350 = vmatpush.msra.mxu0 0.0
        %2351 = vmatpush.msra.mxu0 0.0
        %2352 = vmatpush.msra.mxu0 %v2323
        %2353 = vmatpush.msra.mxu0 %v2322
        %2354 = vmatpush.msra.mxu0 %v2321
        %2355 = vmatpush.msra.mxu0 %v2320
        %2356 = vmatmul.f32.gmra.mxu0 %v2329
        %v2357 = vpop.f32.mrf.mxu0
        %v2358 = vadd.f32 0.0, %v2357
        %2359 = vmatmul.f32.gmra.mxu0 %v2332
        %v2360 = vpop.f32.mrf.mxu0
        %v2361 = vadd.f32 0.0, %v2360
        %2362 = vmatmul.f32.gmra.mxu0 %v2335
        %v2363 = vpop.f32.mrf.mxu0
        %v2364 = vadd.f32 0.0, %v2363
        %2365 = vmatmul.f32.gmra.mxu0 %v2338
        %v2366 = vpop.f32.mrf.mxu0
        %v2367 = vadd.f32 0.0, %v2366
        %2368 = vdwg.mxu0
        %v2369 = vmax.f32 %v2358, 0.0
        %v2370 = vmax.f32 %v2361, 0.0
        %v2371 = vmax.f32 %v2364, 0.0
        %v2372 = vmax.f32 %v2367, 0.0
        %v2373 = vld [vmem:[#allocation14] sm:$0xff]
        %v2374 = vld [vmem:[#allocation14 + $0x8] sm:$0xff]
        %v2375 = vld [vmem:[#allocation14 + $0x10] sm:$0xff]
        %v2376 = vld [vmem:[#allocation14 + $0x18] sm:$0xff]
        %v2378 = vsel %vm585, %v2373, 0
        %v2381 = vsel %vm585, %v2374, 0
        %v2384 = vsel %vm585, %v2375, 0
        %v2387 = vsel %vm585, %v2376, 0
        %2389 = vmatpush.msra.mxu0 0.0
        %2390 = vmatpush.msra.mxu0 0.0
        %2391 = vmatpush.msra.mxu0 0.0
        %2392 = vmatpush.msra.mxu0 0.0
        %2393 = vmatpush.msra.mxu0 0.0
        %2394 = vmatpush.msra.mxu0 0.0
        %2395 = vmatpush.msra.mxu0 0.0
        %2396 = vmatpush.msra.mxu0 0.0
        %2397 = vmatpush.msra.mxu0 0.0
        %2398 = vmatpush.msra.mxu0 0.0
        %2399 = vmatpush.msra.mxu0 0.0
        %2400 = vmatpush.msra.mxu0 0.0
        %2401 = vmatpush.msra.mxu0 %v2372
        %2402 = vmatpush.msra.mxu0 %v2371
        %2403 = vmatpush.msra.mxu0 %v2370
        %2404 = vmatpush.msra.mxu0 %v2369
        %2405 = vmatmul.f32.gmra.mxu0 %v2378
        %v2406 = vpop.f32.mrf.mxu0
        %v2407 = vadd.f32 0.0, %v2406
        %2408 = vmatmul.f32.gmra.mxu0 %v2381
        %v2409 = vpop.f32.mrf.mxu0
        %v2410 = vadd.f32 0.0, %v2409
        %2411 = vmatmul.f32.gmra.mxu0 %v2384
        %v2412 = vpop.f32.mrf.mxu0
        %v2413 = vadd.f32 0.0, %v2412
        %2414 = vmatmul.f32.gmra.mxu0 %v2387
        %v2415 = vpop.f32.mrf.mxu0
        %v2416 = vadd.f32 0.0, %v2415
        %2417 = vdwg.mxu0
        %v2418 = vadd.f32 %v2320, %v2407
        %v2419 = vadd.f32 %v2321, %v2410
        %v2420 = vadd.f32 %v2322, %v2413
        %v2421 = vadd.f32 %v2323, %v2416
        %v2422 = vmax.f32 %v2418, 0.0
        %v2423 = vmax.f32 %v2419, 0.0
        %v2424 = vmax.f32 %v2420, 0.0
        %v2425 = vmax.f32 %v2421, 0.0
        %v2426 = vsel %vm2125, %v2422, 0.0
        %2427 = vadd.xlane.f32.xlu0 %v2426
        %v2428 = vpop.xlane.xlu0 %2427
        %v2429 = vsel %vm2125, %v2423, 0.0
        %2430 = vadd.xlane.f32.xlu0 %v2429
        %v2431 = vpop.xlane.xlu0 %2430
        %v2432 = vsel %vm2125, %v2424, 0.0
        %2433 = vadd.xlane.f32.xlu0 %v2432
        %v2434 = vpop.xlane.xlu0 %2433
        %v2435 = vsel %vm2125, %v2425, 0.0
        %2436 = vadd.xlane.f32.xlu0 %v2435
        %v2437 = vpop.xlane.xlu0 %2436
        %v2438 = vmul.f32 %v2428, %v2144
        %v2439 = vmul.f32 %v2431, %v2144
        %v2440 = vmul.f32 %v2434, %v2144
        %v2441 = vmul.f32 %v2437, %v2144
        %v2442 = vld [vmem:[%s12] sm:$0x3]
        %v2443 = vld [vmem:[%s13] sm:$0x3]
        %v2445 = vsel %vm585, %v2442, 0
        %2447 = vmatpush.msra.mxu0 0.0
        %2448 = vmatpush.msra.mxu0 0.0
        %2449 = vmatpush.msra.mxu0 0.0
        %2450 = vmatpush.msra.mxu0 0.0
        %2451 = vmatpush.msra.mxu0 0.0
        %2452 = vmatpush.msra.mxu0 0.0
        %2453 = vmatpush.msra.mxu0 0.0
        %2454 = vmatpush.msra.mxu0 0.0
        %2455 = vmatpush.msra.mxu0 0.0
        %2456 = vmatpush.msra.mxu0 0.0
        %2457 = vmatpush.msra.mxu0 0.0
        %2458 = vmatpush.msra.mxu0 0.0
        %2459 = vmatpush.msra.mxu0 %v2441
        %2460 = vmatpush.msra.mxu0 %v2440
        %2461 = vmatpush.msra.mxu0 %v2439
        %2462 = vmatpush.msra.mxu0 %v2438
        %2463 = vmatmul.f32.gmra.mxu0 %v2445
        %v2464 = vpop.f32.mrf.mxu0
        %v2465 = vadd.f32 %v2443, %v2464
        %2466 = vdwg.mxu0
        %vm2467 = vcmask 1024
        %2468 = vst.msk [vmem:[%s578] sm:$0x3] %vm2467, %v2465
        %p2469 = scmp.lt.s32.totalorder %s29, 1
        %s2470 = scalar_select %p2469, %s29, 1
        %s2471 = smul.addr %s2470, 2
        %s2472 = scalar_lea.vmem %s14, %s2471
        // Predicated region
        $region105: #{_lambda_.1} parent=75 // pred_check
          %p2473 = pneg %p346
        $region106: #{_lambda_.1} parent=75 // pred_check_branch
          %2475 = sbr.rel (%p2473) target = $region108
        $region107: #{_lambda_.1} parent=75 // pred_region
          _
        $region108: #{_lambda_.1} parent=75 // pred_fallthru
          _
      $region76: #{_lambda_.1} parent=5 // pred_fallthru
        _
      %p2476 = scmp.le.s32.totalorder 2, %s24
      // Predicated region
      $region109: #{_lambda_.1} parent=5 // pred_check
        %p2477 = pneg %p2476
      $region110: #{_lambda_.1} parent=5 // pred_check_branch
        %2479 = sbr.rel (%p2477) target = $region112
      $region111: #{_lambda_.1} parent=5 // pred_region
        %s2480 = ssub.s32 %s24, 2
        // Predicated region
        $region113: #{_lambda_.1} parent=111 // pred_check
          %p2481 = pneg %p352
        $region114: #{_lambda_.1} parent=111 // pred_check_branch
          %2483 = sbr.rel (%p2481) target = $region116
        $region115: #{_lambda_.1} parent=111 // pred_region
          %p2484 = scmp.lt.s32.totalorder %s30, 1
          %s2485 = scalar_select %p2484, %s30, 1
          %s2486 = smul.addr %s2485, 2
          %s2487 = scalar_lea.vmem %s14, %s2486
        $region116: #{_lambda_.1} parent=111 // pred_fallthru
          _
      $region112: #{_lambda_.1} parent=5 // pred_fallthru
        _
    $region6: #{_lambda_.1} parent=1 // loop_footer
      %s28 = sadd.s32 1, %s24
    $region7: #{_lambda_.1} parent=1 // loop_footer_branch
      %23 = sbr.rel target = $region3
    $region8: #{_lambda_.1} parent=1 // loop_exit
      _
    %2488 = vsyncpa [#allocation5], 1
    %s2489 = scalar_lea.sflag [#allocation5], 1
    %2490 = vsyncpa %s2489, 1
    %2491 = vsyncpa [#allocation7], 1
    %2492 = vsyncpa [#allocation10], 1
    %2493 = vsyncpa [#allocation13], 1

</llo_original>
